<compile_context>
chip_gen: v6e
topology: v6e:2x2x1
jax: 0.10.0
libtpu: 0.0.40
codegen_flags: <defaults>
</compile_context>

<pallas_src>
import functools
import numpy as np

import jax
import jax.numpy as jnp
from jax.experimental import pallas as pl
from jax.experimental.pallas import tpu as pltpu

# --------------------------- model config (small, module-consistent) ---------
INPUT_LENGTH = 64            # must be a perfect square
GRID_SIZE = 8
VOCAB_SIZE = 64
EMBEDDING_DIM = 32
NUM_CLASSES = 2
BN_EPS = 1e-5

LAYER_CFG = [(64, 3, 1), (128, 4, 2), (256, 6, 2), (512, 3, 2)]   # resnet50
EXPANSION = 4

# --------------------------- fused-kernel layout constants -------------------
TK = 512                      # weight-tile rows (K)
TN = 512                      # weight-tile cols (N, lane-dense)
MP = 16                       # padded batch rows (bf16 sublane packing)
BUF_W = 2048                  # max flattened activation width (= 8*8*32 = 4*512)
NTILE = BUF_W // TN           # 4 column tiles per logical activation buffer
BUF0, BUF1, BUF2 = 0, NTILE, 2 * NTILE
NSLOTS = 3 * NTILE            # 12 VMEM activation slots of (MP, TN)
OUT_SLOT = NSLOTS             # sentinel destination: write the kernel output


# ----------------------------- the fused kernel ------------------------------
def _backbone_kernel(src_r, dst_r, res_r, hres_r, relu_r, lastk_r, firstk_r,  # SMEM meta
                     x_r, w_r, b_r,                                           # inputs
                     o_r,                                                     # output
                     buf_r, acc_r,                                            # VMEM scratch
                     *, stem_tiles):
    t = pl.program_id(0)

    # One-time: load the flattened embedding image into activation buffer 0.
    @pl.when(t == 0)
    def _():
        for i in range(NTILE):
            buf_r[i] = x_r[:, i * TN:(i + 1) * TN]

    src = src_r[t]
    dst = dst_r[t]

    # Start of a new (layer, n-tile): reset the f32 accumulator.
    @pl.when(firstk_r[t] == 1)
    def _():
        acc_r[...] = jnp.zeros_like(acc_r)

    # The streamed weight tile (bf16) against the VMEM-resident activations.
    lhs = buf_r[src].astype(jnp.bfloat16)                           # [MP, TK]
    acc_r[...] += jnp.dot(lhs, w_r[0], preferred_element_type=jnp.float32)

    # Layer / n-tile epilogue: bias (+ residual) + optional ReLU, write back.
    @pl.when(lastk_r[t] == 1)
    def _():
        y = acc_r[...] + b_r[0]                                     # folded-BN bias
        y = y + hres_r[t].astype(jnp.float32) * buf_r[res_r[t]]     # residual (or 0)
        y = jnp.where(relu_r[t] == 1, jnp.maximum(y, 0.0), y)

        @pl.when(dst < OUT_SLOT)
        def _():
            buf_r[dst] = y

        @pl.when(dst >= OUT_SLOT)
        def _():
            o_r[...] = y                                            # fc logits tile

    # Stem epilogue: after the last stem tile, conv1+bn+relu (4x4x64, flattened
    # (i*4+j)*64+c) sits in buffer 1.  Apply MaxPool2d(3, stride=2, padding=1)
    # (4x4 -> 2x2) and write it into buffer 0 as the first bottleneck's input.
    @pl.when(t == stem_tiles - 1)
    def _():
        for pi in range(2):
            for pj in range(2):
                m = None
                for ii in range(max(0, 2 * pi - 1), min(4, 2 * pi + 2)):
                    for ij in range(max(0, 2 * pj - 1), min(4, 2 * pj + 2)):
                        col = (ii * 4 + ij) * 64
                        v = buf_r[BUF1 + col // TN, :, (col % TN):(col % TN) + 64]
                        m = v if m is None else jnp.maximum(m, v)
                ocol = (pi * 2 + pj) * 64
                buf_r[BUF0, :, ocol:ocol + 64] = m


# ----------------------- init-time weight preparation ------------------------
def _despatialize(w4, hin, win, stride, pad):
    """Exact rewrite of a conv as a dense matmul over flattened (spatial, channel).

    w4: [kh, kw, cin, cout]  ->  W: [hin*win*cin, hout*wout*cout]
    Flattening convention: index = (row*W + col)*C + c (matches a plain reshape
    of an NHWC tensor).  Out-of-range taps are dropped (they contribute zero).
    """
    kh, kw, cin, cout = w4.shape
    hout = (hin + 2 * pad - kh) // stride + 1
    wout = (win + 2 * pad - kw) // stride + 1
    W = np.zeros((hin * win * cin, hout * wout * cout), np.float32)
    for oi in range(hout):
        for oj in range(wout):
            for ki in range(kh):
                for kj in range(kw):
                    ii = oi * stride - pad + ki
                    ij = oj * stride - pad + kj
                    if 0 <= ii < hin and 0 <= ij < win:
                        W[(ii * win + ij) * cin:(ii * win + ij + 1) * cin,
                          (oi * wout + oj) * cout:(oi * wout + oj + 1) * cout] = w4[ki, kj]
    return W, hout, wout


def _flat_bias(b, hout, wout):
    return np.tile(b.astype(np.float32), hout * wout)


def _conv_bn(rng, kh, kw, cin, cout):
    """Random conv weight + BN params, with inference BN folded into (W, bias)."""
    w = (rng.standard_normal((kh, kw, cin, cout)) / np.sqrt(kh * kw * cin)).astype(np.float32)
    gamma = (1.0 + 0.1 * rng.standard_normal(cout)).astype(np.float32)
    beta = (0.05 * rng.standard_normal(cout)).astype(np.float32)
    scale = gamma / np.sqrt(1.0 + BN_EPS)       # running_mean=0, running_var=1
    return w * scale[None, None, None, :], beta  # bias = beta - mean*scale = beta


class _Schedule:
    """Flattens every layer into fixed (TK, TN) weight tiles + SMEM metadata."""

    def __init__(self):
        self.w_tiles = []
        self.b_tiles = []
        self.meta = {k: [] for k in
                     ('src', 'dst', 'res', 'hasres', 'relu', 'lastk', 'firstk')}

    def add_layer(self, W, bias, src_base, dst_base, res_base, relu):
        K, N = W.shape
        assert K <= BUF_W and (dst_base == OUT_SLOT or N <= BUF_W)
        KT = -(-K // TK)
        NT = -(-N // TN)
        Wp = np.zeros((KT * TK, NT * TN), np.float32)
        Wp[:K, :N] = W
        bp = np.zeros((NT * TN,), np.float32)
        bp[:N] = bias
        for nt in range(NT):
            for kt in range(KT):
                self.w_tiles.append(Wp[kt * TK:(kt + 1) * TK, nt * TN:(nt + 1) * TN])
                self.b_tiles.append(bp[nt * TN:(nt + 1) * TN])
                self.meta['src'].append(src_base + kt)
                self.meta['dst'].append(dst_base + nt)
                self.meta['res'].append((res_base + nt) if res_base is not None else 0)
                self.meta['hasres'].append(1 if res_base is not None else 0)
                self.meta['relu'].append(1 if relu else 0)
                self.meta['lastk'].append(1 if kt == KT - 1 else 0)
                self.meta['firstk'].append(1 if kt == 0 else 0)


def build_model(seed=0):
    rng = np.random.default_rng(seed)
    emb = (0.02 * rng.standard_normal((VOCAB_SIZE, EMBEDDING_DIM))).astype(np.float32)

    sched = _Schedule()

    # --- stem: conv 7x7 s2 p3 (EMBEDDING_DIM -> 64) + BN + ReLU, 8x8 -> 4x4.
    w, b = _conv_bn(rng, 7, 7, EMBEDDING_DIM, 64)
    W, ho, wo = _despatialize(w, GRID_SIZE, GRID_SIZE, 2, 3)
    sched.add_layer(W, _flat_bias(b, ho, wo), BUF0, BUF1, None, relu=True)
    stem_tiles = len(sched.w_tiles)
    # maxpool 3x3 s2 p1 (4x4 -> 2x2) is done in-kernel right after the stem tiles.

    sp = 2                       # spatial size after the maxpool
    in_ch = 64
    for planes, nblocks, stride in LAYER_CFG:
        for bidx in range(nblocks):
            s = stride if bidx == 0 else 1
            has_down = (bidx == 0)
            # conv1 1x1 + BN + ReLU
            w1, b1 = _conv_bn(rng, 1, 1, in_ch, planes)
            W1, _, _ = _despatialize(w1, sp, sp, 1, 0)
            sched.add_layer(W1, _flat_bias(b1, sp, sp), BUF0, BUF1, None, relu=True)
            # conv2 3x3 stride s pad 1 + BN + ReLU
            w2, b2 = _conv_bn(rng, 3, 3, planes, planes)
            W2, so, _ = _despatialize(w2, sp, sp, s, 1)
            sched.add_layer(W2, _flat_bias(b2, so, so), BUF1, BUF2, None, relu=True)
            # downsample 1x1 stride s + BN (first block of every stage)
            if has_down:
                wd, bd = _conv_bn(rng, 1, 1, in_ch, planes * EXPANSION)
                Wd, _, _ = _despatialize(wd, sp, sp, s, 0)
                sched.add_layer(Wd, _flat_bias(bd, so, so), BUF0, BUF1, None, relu=False)
                res_base = BUF1
            else:
                res_base = BUF0
            # conv3 1x1 + BN, fused residual add + ReLU
            w3, b3 = _conv_bn(rng, 1, 1, planes, planes * EXPANSION)
            W3, _, _ = _despatialize(w3, so, so, 1, 0)
            sched.add_layer(W3, _flat_bias(b3, so, so), BUF2, BUF0, res_base, relu=True)
            sp = so
            in_ch = planes * EXPANSION

    # --- global avg-pool is the identity at 1x1 spatial; fc 2048 -> NUM_CLASSES.
    wfc = (rng.standard_normal((512 * EXPANSION, NUM_CLASSES))
           / np.sqrt(512 * EXPANSION)).astype(np.float32)
    bfc = (0.01 * rng.standard_normal(NUM_CLASSES)).astype(np.float32)
    sched.add_layer(wfc, bfc, BUF0, OUT_SLOT, None, relu=False)

    n_tiles = len(sched.w_tiles)
    w_all = jnp.asarray(np.stack(sched.w_tiles), dtype=jnp.bfloat16)          # [T,512,512]
    b_all = jnp.asarray(np.stack(sched.b_tiles)[:, None, :], dtype=jnp.float32)  # [T,1,512]
    meta = tuple(jnp.asarray(np.asarray(sched.meta[k], np.int32))
                 for k in ('src', 'dst', 'res', 'hasres', 'relu', 'lastk', 'firstk'))
    params = dict(emb=jnp.asarray(emb), w_all=w_all, b_all=b_all, meta=meta)
    return params, stem_tiles, n_tiles


# ----------------------------- forward wrapper -------------------------------
def make_forward(stem_tiles, n_tiles):
    kernel = functools.partial(_backbone_kernel, stem_tiles=stem_tiles)

    grid_spec = pltpu.PrefetchScalarGridSpec(
        num_scalar_prefetch=7,                       # per-tile metadata -> SMEM
        grid=(n_tiles,),
        in_specs=[
            # flattened embedding image, VMEM-resident for the whole call
            pl.BlockSpec((MP, BUF_W), lambda t, *_: (0, 0)),
            # weight tile stream (auto double-buffered HBM->VMEM DMA)
            pl.BlockSpec((1, TK, TN), lambda t, *_: (t, 0, 0)),
            # per-tile folded-BN bias stream
            pl.BlockSpec((1, 1, TN), lambda t, *_: (t, 0, 0)),
        ],
        out_specs=pl.BlockSpec((MP, TN), lambda t, *_: (0, 0)),   # resident logits tile
        scratch_shapes=[
            pltpu.VMEM((NSLOTS, MP, TN), jnp.float32),   # 3 ping-pong activation buffers
            pltpu.VMEM((MP, TN), jnp.float32),           # per-(layer, n-tile) accumulator
        ],
    )

    call = pl.pallas_call(
        kernel,
        grid_spec=grid_spec,
        out_shape=jax.ShapeDtypeStruct((MP, TN), jnp.float32),
        compiler_params=pltpu.CompilerParams(
            dimension_semantics=("arbitrary",),      # sequential layer chain
        ),
    )

    def forward(params, tokens):
        B = tokens.shape[0]
        # nn.Embedding (gather) + Dropout(p=0.0) identity; NHWC flatten matches the
        # (i*W + j)*C + c convention used to build the de-spatialized weights.
        x = jnp.take(params['emb'], tokens, axis=0)                  # [B, L, E]
        x = x.reshape(B, GRID_SIZE * GRID_SIZE * EMBEDDING_DIM)      # [B, 2048]
        x = jnp.pad(x.astype(jnp.float32), ((0, MP - B), (0, 0)))    # [16, 2048]
        out = call(*params['meta'], x, params['w_all'], params['b_all'])
        return out[:B, :NUM_CLASSES]

    return forward


# ----------------------------------- main ------------------------------------
if __name__ == "__main__":
    assert GRID_SIZE * GRID_SIZE == INPUT_LENGTH

    params, stem_tiles, n_tiles = build_model(seed=0)
    forward = make_forward(stem_tiles, n_tiles)
    fwd = jax.jit(forward)

    key = jax.random.PRNGKey(0)
    tokens = jax.random.randint(key, (2, INPUT_LENGTH), 0, VOCAB_SIZE, dtype=jnp.int32)

    out = fwd(params, tokens)
    out = jax.block_until_ready(out)

    assert out.shape == (2, NUM_CLASSES), out.shape
    assert bool(jnp.all(jnp.isfinite(out)))
    # TODO(synk): embedding gather and the final [:B, :2] crop stay in XLA (no useful
    # Pallas equivalent at this size); BN uses inference (running-stats) semantics.
    print("KERNEL_OK")
</pallas_src>

<mosaic_0001>
module attributes {stable_mosaic.version = 11 : i64} {
  func.func @_backbone_kernel(%arg0: i32, %arg1: memref<107xi32, #tpu.memory_space<smem>>, %arg2: memref<107xi32, #tpu.memory_space<smem>>, %arg3: memref<107xi32, #tpu.memory_space<smem>>, %arg4: memref<107xi32, #tpu.memory_space<smem>>, %arg5: memref<107xi32, #tpu.memory_space<smem>>, %arg6: memref<107xi32, #tpu.memory_space<smem>>, %arg7: memref<107xi32, #tpu.memory_space<smem>>, %arg8: memref<16x2048xf32, #tpu.memory_space<vmem>>, %arg9: memref<1x512x512xbf16, #tpu.memory_space<vmem>>, %arg10: memref<1x1x512xf32, #tpu.memory_space<vmem>>, %arg11: memref<16x512xf32, #tpu.memory_space<vmem>>, %arg12: memref<12x16x512xf32, #tpu.memory_space<vmem>>, %arg13: memref<16x512xf32, #tpu.memory_space<vmem>>) attributes {dimension_semantics = [#tpu.dimension_semantics<arbitrary>], iteration_bounds = array<i64: 107>, scalar_prefetch = 7 : i64, scratch_operands = 2 : i64, tpu.core_type = #tpu.core_type<tc>, window_params = [{pipeline_mode = #tpu.pipeline_mode<synchronous>, transform_indices = @transform_0, window_bounds = array<i64: 16, 2048>}, {transform_indices = @transform_1, window_bounds = array<i64: 1, 512, 512>}, {transform_indices = @transform_2, window_bounds = array<i64: 1, 1, 512>}, {pipeline_mode = #tpu.pipeline_mode<synchronous>, transform_indices = @transform_3, window_bounds = array<i64: 16, 512>}]} {
    %c0_i32 = arith.constant 0 : i32
    %0 = arith.cmpi eq, %arg0, %c0_i32 : i32
    %1 = arith.extui %0 : i1 to i32
    %c0_i32_0 = arith.constant 0 : i32
    %2 = arith.cmpi ne, %1, %c0_i32_0 : i32
    scf.if %2 {
      %c0_13 = arith.constant 0 : index
      %c0_14 = arith.constant 0 : index
      %30 = vector.load %arg8[%c0_13, %c0_14] : memref<16x2048xf32, #tpu.memory_space<vmem>>, vector<16x512xf32>
      %c0_15 = arith.constant 0 : index
      %c0_16 = arith.constant 0 : index
      %c0_17 = arith.constant 0 : index
      %31 = vector.load %arg12[%c0_15, %c0_16, %c0_17] : memref<12x16x512xf32, #tpu.memory_space<vmem>>, vector<1x16x512xf32>
      %32 = vector.shape_cast %31 : vector<1x16x512xf32> to vector<16x512xf32>
      %33 = vector.shape_cast %30 : vector<16x512xf32> to vector<1x16x512xf32>
      tpu.vector_store %arg12[%c0_15, %c0_16, %c0_17], %33 {strides = array<i32>} : memref<12x16x512xf32, #tpu.memory_space<vmem>>, vector<1x16x512xf32>,
      %c0_18 = arith.constant 0 : index
      %c512 = arith.constant 512 : index
      %34 = vector.load %arg8[%c0_18, %c512] : memref<16x2048xf32, #tpu.memory_space<vmem>>, vector<16x512xf32>
      %c1 = arith.constant 1 : index
      %c0_19 = arith.constant 0 : index
      %c0_20 = arith.constant 0 : index
      %35 = vector.load %arg12[%c1, %c0_19, %c0_20] : memref<12x16x512xf32, #tpu.memory_space<vmem>>, vector<1x16x512xf32>
      %36 = vector.shape_cast %35 : vector<1x16x512xf32> to vector<16x512xf32>
      %37 = vector.shape_cast %34 : vector<16x512xf32> to vector<1x16x512xf32>
      tpu.vector_store %arg12[%c1, %c0_19, %c0_20], %37 {strides = array<i32>} : memref<12x16x512xf32, #tpu.memory_space<vmem>>, vector<1x16x512xf32>,
      %c0_21 = arith.constant 0 : index
      %c1024 = arith.constant 1024 : index
      %38 = vector.load %arg8[%c0_21, %c1024] : memref<16x2048xf32, #tpu.memory_space<vmem>>, vector<16x512xf32>
      %c2 = arith.constant 2 : index
      %c0_22 = arith.constant 0 : index
      %c0_23 = arith.constant 0 : index
      %39 = vector.load %arg12[%c2, %c0_22, %c0_23] : memref<12x16x512xf32, #tpu.memory_space<vmem>>, vector<1x16x512xf32>
      %40 = vector.shape_cast %39 : vector<1x16x512xf32> to vector<16x512xf32>
      %41 = vector.shape_cast %38 : vector<16x512xf32> to vector<1x16x512xf32>
      tpu.vector_store %arg12[%c2, %c0_22, %c0_23], %41 {strides = array<i32>} : memref<12x16x512xf32, #tpu.memory_space<vmem>>, vector<1x16x512xf32>,
      %c0_24 = arith.constant 0 : index
      %c1536 = arith.constant 1536 : index
      %42 = vector.load %arg8[%c0_24, %c1536] : memref<16x2048xf32, #tpu.memory_space<vmem>>, vector<16x512xf32>
      %c3 = arith.constant 3 : index
      %c0_25 = arith.constant 0 : index
      %c0_26 = arith.constant 0 : index
      %43 = vector.load %arg12[%c3, %c0_25, %c0_26] : memref<12x16x512xf32, #tpu.memory_space<vmem>>, vector<1x16x512xf32>
      %44 = vector.shape_cast %43 : vector<1x16x512xf32> to vector<16x512xf32>
      %45 = vector.shape_cast %42 : vector<16x512xf32> to vector<1x16x512xf32>
      tpu.vector_store %arg12[%c3, %c0_25, %c0_26], %45 {strides = array<i32>} : memref<12x16x512xf32, #tpu.memory_space<vmem>>, vector<1x16x512xf32>,
    } else {
    }
    %3 = arith.index_cast %arg0 : i32 to index
    %4 = memref.load %arg1[%3] : memref<107xi32, #tpu.memory_space<smem>>
    %5 = arith.index_cast %arg0 : i32 to index
    %6 = memref.load %arg2[%5] : memref<107xi32, #tpu.memory_space<smem>>
    %7 = arith.index_cast %arg0 : i32 to index
    %8 = memref.load %arg7[%7] : memref<107xi32, #tpu.memory_space<smem>>
    %c1_i32 = arith.constant 1 : i32
    %9 = arith.cmpi eq, %8, %c1_i32 : i32
    %10 = arith.extui %9 : i1 to i32
    %c0_i32_1 = arith.constant 0 : i32
    %11 = arith.cmpi ne, %10, %c0_i32_1 : i32
    scf.if %11 {
      %cst_13 = arith.constant 0.000000e+00 : f32
      %30 = vector.broadcast %cst_13 : f32 to vector<16x512xf32>
      %c0_14 = arith.constant 0 : index
      %c0_15 = arith.constant 0 : index
      %31 = vector.load %arg13[%c0_14, %c0_15] : memref<16x512xf32, #tpu.memory_space<vmem>>, vector<16x512xf32>
      tpu.vector_store %arg13[%c0_14, %c0_15], %30 {strides = array<i32>} : memref<16x512xf32, #tpu.memory_space<vmem>>, vector<16x512xf32>,
    } else {
    }
    %12 = arith.index_cast %4 : i32 to index
    %c0 = arith.constant 0 : index
    %c0_2 = arith.constant 0 : index
    %13 = vector.load %arg12[%12, %c0, %c0_2] : memref<12x16x512xf32, #tpu.memory_space<vmem>>, vector<1x16x512xf32>
    %14 = vector.shape_cast %13 : vector<1x16x512xf32> to vector<16x512xf32>
    %15 = arith.truncf %14 : vector<16x512xf32> to vector<16x512xbf16>
    %c0_3 = arith.constant 0 : index
    %c0_4 = arith.constant 0 : index
    %16 = vector.load %arg13[%c0_3, %c0_4] : memref<16x512xf32, #tpu.memory_space<vmem>>, vector<16x512xf32>
    %c0_5 = arith.constant 0 : index
    %c0_6 = arith.constant 0 : index
    %c0_7 = arith.constant 0 : index
    %17 = vector.load %arg9[%c0_5, %c0_6, %c0_7] : memref<1x512x512xbf16, #tpu.memory_space<vmem>>, vector<1x512x512xbf16>
    %18 = vector.shape_cast %17 : vector<1x512x512xbf16> to vector<512x512xbf16>
    %cst = arith.constant dense<0.000000e+00> : vector<16x512xf32>
    %19 = tpu.matmul %15, %18, %cst {dimension_numbers = #tpu.dot_dimension_numbers<[1], [0], [0], [1], [0, 0, 1, 1], [], []>} : vector<16x512xbf16>, vector<512x512xbf16>, vector<16x512xf32> -> vector<16x512xf32>
    %20 = arith.addf %16, %19 : vector<16x512xf32>
    %c0_8 = arith.constant 0 : index
    %c0_9 = arith.constant 0 : index
    %21 = vector.load %arg13[%c0_8, %c0_9] : memref<16x512xf32, #tpu.memory_space<vmem>>, vector<16x512xf32>
    tpu.vector_store %arg13[%c0_8, %c0_9], %20 {strides = array<i32>} : memref<16x512xf32, #tpu.memory_space<vmem>>, vector<16x512xf32>,
    %22 = arith.index_cast %arg0 : i32 to index
    %23 = memref.load %arg6[%22] : memref<107xi32, #tpu.memory_space<smem>>
    %c1_i32_10 = arith.constant 1 : i32
    %24 = arith.cmpi eq, %23, %c1_i32_10 : i32
    %25 = arith.extui %24 : i1 to i32
    %c0_i32_11 = arith.constant 0 : i32
    %26 = arith.cmpi ne, %25, %c0_i32_11 : i32
    scf.if %26 {
      %c0_13 = arith.constant 0 : index
      %c0_14 = arith.constant 0 : index
      %30 = vector.load %arg13[%c0_13, %c0_14] : memref<16x512xf32, #tpu.memory_space<vmem>>, vector<16x512xf32>
      %c0_15 = arith.constant 0 : index
      %c0_16 = arith.constant 0 : index
      %c0_17 = arith.constant 0 : index
      %31 = vector.load %arg10[%c0_15, %c0_16, %c0_17] : memref<1x1x512xf32, #tpu.memory_space<vmem>>, vector<1x1x512xf32>
      %32 = vector.shape_cast %31 : vector<1x1x512xf32> to vector<1x512xf32>
      %33 = vector.broadcast %32 : vector<1x512xf32> to vector<16x512xf32>
      %34 = arith.addf %30, %33 : vector<16x512xf32>
      %35 = arith.index_cast %arg0 : i32 to index
      %36 = memref.load %arg4[%35] : memref<107xi32, #tpu.memory_space<smem>>
      %37 = arith.sitofp %36 : i32 to f32
      %38 = arith.index_cast %arg0 : i32 to index
      %39 = memref.load %arg3[%38] : memref<107xi32, #tpu.memory_space<smem>>
      %40 = arith.index_cast %39 : i32 to index
      %c0_18 = arith.constant 0 : index
      %c0_19 = arith.constant 0 : index
      %41 = vector.load %arg12[%40, %c0_18, %c0_19] : memref<12x16x512xf32, #tpu.memory_space<vmem>>, vector<1x16x512xf32>
      %42 = vector.shape_cast %41 : vector<1x16x512xf32> to vector<16x512xf32>
      %43 = vector.broadcast %37 : f32 to vector<16x512xf32>
      %44 = arith.mulf %43, %42 : vector<16x512xf32>
      %45 = arith.addf %34, %44 : vector<16x512xf32>
      %46 = arith.index_cast %arg0 : i32 to index
      %47 = memref.load %arg5[%46] : memref<107xi32, #tpu.memory_space<smem>>
      %c1_i32_20 = arith.constant 1 : i32
      %48 = arith.cmpi eq, %47, %c1_i32_20 : i32
      %cst_21 = arith.constant 0.000000e+00 : f32
      %49 = vector.broadcast %cst_21 : f32 to vector<16x512xf32>
      %50 = arith.maximumf %45, %49 : vector<16x512xf32>
      %51 = arith.select %48, %50, %45 : vector<16x512xf32>
      %c12_i32 = arith.constant 12 : i32
      %52 = arith.cmpi slt, %6, %c12_i32 : i32
      %53 = arith.extui %52 : i1 to i32
      %c0_i32_22 = arith.constant 0 : i32
      %54 = arith.cmpi ne, %53, %c0_i32_22 : i32
      scf.if %54 {
        %58 = arith.index_cast %6 : i32 to index
        %c0_25 = arith.constant 0 : index
        %c0_26 = arith.constant 0 : index
        %59 = vector.load %arg12[%58, %c0_25, %c0_26] : memref<12x16x512xf32, #tpu.memory_space<vmem>>, vector<1x16x512xf32>
        %60 = vector.shape_cast %59 : vector<1x16x512xf32> to vector<16x512xf32>
        %61 = vector.shape_cast %51 : vector<16x512xf32> to vector<1x16x512xf32>
        tpu.vector_store %arg12[%58, %c0_25, %c0_26], %61 {strides = array<i32>} : memref<12x16x512xf32, #tpu.memory_space<vmem>>, vector<1x16x512xf32>,
      } else {
      }
      %c12_i32_23 = arith.constant 12 : i32
      %55 = arith.cmpi sge, %6, %c12_i32_23 : i32
      %56 = arith.extui %55 : i1 to i32
      %c0_i32_24 = arith.constant 0 : i32
      %57 = arith.cmpi ne, %56, %c0_i32_24 : i32
      scf.if %57 {
        %c0_25 = arith.constant 0 : index
        %c0_26 = arith.constant 0 : index
        %58 = vector.load %arg11[%c0_25, %c0_26] : memref<16x512xf32, #tpu.memory_space<vmem>>, vector<16x512xf32>
        tpu.vector_store %arg11[%c0_25, %c0_26], %51 {strides = array<i32>} : memref<16x512xf32, #tpu.memory_space<vmem>>, vector<16x512xf32>,
      } else {
      }
    } else {
    }
    %c7_i32 = arith.constant 7 : i32
    %27 = arith.cmpi eq, %arg0, %c7_i32 : i32
    %28 = arith.extui %27 : i1 to i32
    %c0_i32_12 = arith.constant 0 : i32
    %29 = arith.cmpi ne, %28, %c0_i32_12 : i32
    scf.if %29 {
      %c4 = arith.constant 4 : index
      %c0_13 = arith.constant 0 : index
      %c0_14 = arith.constant 0 : index
      %30 = vector.load %arg12[%c4, %c0_13, %c0_14] : memref<12x16x512xf32, #tpu.memory_space<vmem>>, vector<1x16x64xf32>
      %31 = vector.shape_cast %30 : vector<1x16x64xf32> to vector<16x64xf32>
      %c4_15 = arith.constant 4 : index
      %c0_16 = arith.constant 0 : index
      %c64 = arith.constant 64 : index
      %32 = vector.load %arg12[%c4_15, %c0_16, %c64] : memref<12x16x512xf32, #tpu.memory_space<vmem>>, vector<1x16x64xf32>
      %33 = vector.shape_cast %32 : vector<1x16x64xf32> to vector<16x64xf32>
      %34 = arith.maximumf %31, %33 : vector<16x64xf32>
      %c4_17 = arith.constant 4 : index
      %c0_18 = arith.constant 0 : index
      %c256 = arith.constant 256 : index
      %35 = vector.load %arg12[%c4_17, %c0_18, %c256] : memref<12x16x512xf32, #tpu.memory_space<vmem>>, vector<1x16x64xf32>
      %36 = vector.shape_cast %35 : vector<1x16x64xf32> to vector<16x64xf32>
      %37 = arith.maximumf %34, %36 : vector<16x64xf32>
      %c4_19 = arith.constant 4 : index
      %c0_20 = arith.constant 0 : index
      %c320 = arith.constant 320 : index
      %38 = vector.load %arg12[%c4_19, %c0_20, %c320] : memref<12x16x512xf32, #tpu.memory_space<vmem>>, vector<1x16x64xf32>
      %39 = vector.shape_cast %38 : vector<1x16x64xf32> to vector<16x64xf32>
      %40 = arith.maximumf %37, %39 : vector<16x64xf32>
      %c0_21 = arith.constant 0 : index
      %c0_22 = arith.constant 0 : index
      %c0_23 = arith.constant 0 : index
      %41 = vector.load %arg12[%c0_21, %c0_22, %c0_23] : memref<12x16x512xf32, #tpu.memory_space<vmem>>, vector<1x16x64xf32>
      %42 = vector.shape_cast %41 : vector<1x16x64xf32> to vector<16x64xf32>
      %43 = vector.shape_cast %40 : vector<16x64xf32> to vector<1x16x64xf32>
      tpu.vector_store %arg12[%c0_21, %c0_22, %c0_23], %43 {strides = array<i32>} : memref<12x16x512xf32, #tpu.memory_space<vmem>>, vector<1x16x64xf32>,
      %c4_24 = arith.constant 4 : index
      %c0_25 = arith.constant 0 : index
      %c64_26 = arith.constant 64 : index
      %44 = vector.load %arg12[%c4_24, %c0_25, %c64_26] : memref<12x16x512xf32, #tpu.memory_space<vmem>>, vector<1x16x64xf32>
      %45 = vector.shape_cast %44 : vector<1x16x64xf32> to vector<16x64xf32>
      %c4_27 = arith.constant 4 : index
      %c0_28 = arith.constant 0 : index
      %c128 = arith.constant 128 : index
      %46 = vector.load %arg12[%c4_27, %c0_28, %c128] : memref<12x16x512xf32, #tpu.memory_space<vmem>>, vector<1x16x64xf32>
      %47 = vector.shape_cast %46 : vector<1x16x64xf32> to vector<16x64xf32>
      %48 = arith.maximumf %45, %47 : vector<16x64xf32>
      %c4_29 = arith.constant 4 : index
      %c0_30 = arith.constant 0 : index
      %c192 = arith.constant 192 : index
      %49 = vector.load %arg12[%c4_29, %c0_30, %c192] : memref<12x16x512xf32, #tpu.memory_space<vmem>>, vector<1x16x64xf32>
      %50 = vector.shape_cast %49 : vector<1x16x64xf32> to vector<16x64xf32>
      %51 = arith.maximumf %48, %50 : vector<16x64xf32>
      %c4_31 = arith.constant 4 : index
      %c0_32 = arith.constant 0 : index
      %c320_33 = arith.constant 320 : index
      %52 = vector.load %arg12[%c4_31, %c0_32, %c320_33] : memref<12x16x512xf32, #tpu.memory_space<vmem>>, vector<1x16x64xf32>
      %53 = vector.shape_cast %52 : vector<1x16x64xf32> to vector<16x64xf32>
      %54 = arith.maximumf %51, %53 : vector<16x64xf32>
      %c4_34 = arith.constant 4 : index
      %c0_35 = arith.constant 0 : index
      %c384 = arith.constant 384 : index
      %55 = vector.load %arg12[%c4_34, %c0_35, %c384] : memref<12x16x512xf32, #tpu.memory_space<vmem>>, vector<1x16x64xf32>
      %56 = vector.shape_cast %55 : vector<1x16x64xf32> to vector<16x64xf32>
      %57 = arith.maximumf %54, %56 : vector<16x64xf32>
      %c4_36 = arith.constant 4 : index
      %c0_37 = arith.constant 0 : index
      %c448 = arith.constant 448 : index
      %58 = vector.load %arg12[%c4_36, %c0_37, %c448] : memref<12x16x512xf32, #tpu.memory_space<vmem>>, vector<1x16x64xf32>
      %59 = vector.shape_cast %58 : vector<1x16x64xf32> to vector<16x64xf32>
      %60 = arith.maximumf %57, %59 : vector<16x64xf32>
      %c0_38 = arith.constant 0 : index
      %c0_39 = arith.constant 0 : index
      %c64_40 = arith.constant 64 : index
      %61 = vector.load %arg12[%c0_38, %c0_39, %c64_40] : memref<12x16x512xf32, #tpu.memory_space<vmem>>, vector<1x16x64xf32>
      %62 = vector.shape_cast %61 : vector<1x16x64xf32> to vector<16x64xf32>
      %63 = vector.shape_cast %60 : vector<16x64xf32> to vector<1x16x64xf32>
      tpu.vector_store %arg12[%c0_38, %c0_39, %c64_40], %63 {strides = array<i32>} : memref<12x16x512xf32, #tpu.memory_space<vmem>>, vector<1x16x64xf32>,
      %c4_41 = arith.constant 4 : index
      %c0_42 = arith.constant 0 : index
      %c256_43 = arith.constant 256 : index
      %64 = vector.load %arg12[%c4_41, %c0_42, %c256_43] : memref<12x16x512xf32, #tpu.memory_space<vmem>>, vector<1x16x64xf32>
      %65 = vector.shape_cast %64 : vector<1x16x64xf32> to vector<16x64xf32>
      %c4_44 = arith.constant 4 : index
      %c0_45 = arith.constant 0 : index
      %c320_46 = arith.constant 320 : index
      %66 = vector.load %arg12[%c4_44, %c0_45, %c320_46] : memref<12x16x512xf32, #tpu.memory_space<vmem>>, vector<1x16x64xf32>
      %67 = vector.shape_cast %66 : vector<1x16x64xf32> to vector<16x64xf32>
      %68 = arith.maximumf %65, %67 : vector<16x64xf32>
      %c5 = arith.constant 5 : index
      %c0_47 = arith.constant 0 : index
      %c0_48 = arith.constant 0 : index
      %69 = vector.load %arg12[%c5, %c0_47, %c0_48] : memref<12x16x512xf32, #tpu.memory_space<vmem>>, vector<1x16x64xf32>
      %70 = vector.shape_cast %69 : vector<1x16x64xf32> to vector<16x64xf32>
      %71 = arith.maximumf %68, %70 : vector<16x64xf32>
      %c5_49 = arith.constant 5 : index
      %c0_50 = arith.constant 0 : index
      %c64_51 = arith.constant 64 : index
      %72 = vector.load %arg12[%c5_49, %c0_50, %c64_51] : memref<12x16x512xf32, #tpu.memory_space<vmem>>, vector<1x16x64xf32>
      %73 = vector.shape_cast %72 : vector<1x16x64xf32> to vector<16x64xf32>
      %74 = arith.maximumf %71, %73 : vector<16x64xf32>
      %c5_52 = arith.constant 5 : index
      %c0_53 = arith.constant 0 : index
      %c256_54 = arith.constant 256 : index
      %75 = vector.load %arg12[%c5_52, %c0_53, %c256_54] : memref<12x16x512xf32, #tpu.memory_space<vmem>>, vector<1x16x64xf32>
      %76 = vector.shape_cast %75 : vector<1x16x64xf32> to vector<16x64xf32>
      %77 = arith.maximumf %74, %76 : vector<16x64xf32>
      %c5_55 = arith.constant 5 : index
      %c0_56 = arith.constant 0 : index
      %c320_57 = arith.constant 320 : index
      %78 = vector.load %arg12[%c5_55, %c0_56, %c320_57] : memref<12x16x512xf32, #tpu.memory_space<vmem>>, vector<1x16x64xf32>
      %79 = vector.shape_cast %78 : vector<1x16x64xf32> to vector<16x64xf32>
      %80 = arith.maximumf %77, %79 : vector<16x64xf32>
      %c0_58 = arith.constant 0 : index
      %c0_59 = arith.constant 0 : index
      %c128_60 = arith.constant 128 : index
      %81 = vector.load %arg12[%c0_58, %c0_59, %c128_60] : memref<12x16x512xf32, #tpu.memory_space<vmem>>, vector<1x16x64xf32>
      %82 = vector.shape_cast %81 : vector<1x16x64xf32> to vector<16x64xf32>
      %83 = vector.shape_cast %80 : vector<16x64xf32> to vector<1x16x64xf32>
      tpu.vector_store %arg12[%c0_58, %c0_59, %c128_60], %83 {strides = array<i32>} : memref<12x16x512xf32, #tpu.memory_space<vmem>>, vector<1x16x64xf32>,
      %c4_61 = arith.constant 4 : index
      %c0_62 = arith.constant 0 : index
      %c320_63 = arith.constant 320 : index
      %84 = vector.load %arg12[%c4_61, %c0_62, %c320_63] : memref<12x16x512xf32, #tpu.memory_space<vmem>>, vector<1x16x64xf32>
      %85 = vector.shape_cast %84 : vector<1x16x64xf32> to vector<16x64xf32>
      %c4_64 = arith.constant 4 : index
      %c0_65 = arith.constant 0 : index
      %c384_66 = arith.constant 384 : index
      %86 = vector.load %arg12[%c4_64, %c0_65, %c384_66] : memref<12x16x512xf32, #tpu.memory_space<vmem>>, vector<1x16x64xf32>
      %87 = vector.shape_cast %86 : vector<1x16x64xf32> to vector<16x64xf32>
      %88 = arith.maximumf %85, %87 : vector<16x64xf32>
      %c4_67 = arith.constant 4 : index
      %c0_68 = arith.constant 0 : index
      %c448_69 = arith.constant 448 : index
      %89 = vector.load %arg12[%c4_67, %c0_68, %c448_69] : memref<12x16x512xf32, #tpu.memory_space<vmem>>, vector<1x16x64xf32>
      %90 = vector.shape_cast %89 : vector<1x16x64xf32> to vector<16x64xf32>
      %91 = arith.maximumf %88, %90 : vector<16x64xf32>
      %c5_70 = arith.constant 5 : index
      %c0_71 = arith.constant 0 : index
      %c64_72 = arith.constant 64 : index
      %92 = vector.load %arg12[%c5_70, %c0_71, %c64_72] : memref<12x16x512xf32, #tpu.memory_space<vmem>>, vector<1x16x64xf32>
      %93 = vector.shape_cast %92 : vector<1x16x64xf32> to vector<16x64xf32>
      %94 = arith.maximumf %91, %93 : vector<16x64xf32>
      %c5_73 = arith.constant 5 : index
      %c0_74 = arith.constant 0 : index
      %c128_75 = arith.constant 128 : index
      %95 = vector.load %arg12[%c5_73, %c0_74, %c128_75] : memref<12x16x512xf32, #tpu.memory_space<vmem>>, vector<1x16x64xf32>
      %96 = vector.shape_cast %95 : vector<1x16x64xf32> to vector<16x64xf32>
      %97 = arith.maximumf %94, %96 : vector<16x64xf32>
      %c5_76 = arith.constant 5 : index
      %c0_77 = arith.constant 0 : index
      %c192_78 = arith.constant 192 : index
      %98 = vector.load %arg12[%c5_76, %c0_77, %c192_78] : memref<12x16x512xf32, #tpu.memory_space<vmem>>, vector<1x16x64xf32>
      %99 = vector.shape_cast %98 : vector<1x16x64xf32> to vector<16x64xf32>
      %100 = arith.maximumf %97, %99 : vector<16x64xf32>
      %c5_79 = arith.constant 5 : index
      %c0_80 = arith.constant 0 : index
      %c320_81 = arith.constant 320 : index
      %101 = vector.load %arg12[%c5_79, %c0_80, %c320_81] : memref<12x16x512xf32, #tpu.memory_space<vmem>>, vector<1x16x64xf32>
      %102 = vector.shape_cast %101 : vector<1x16x64xf32> to vector<16x64xf32>
      %103 = arith.maximumf %100, %102 : vector<16x64xf32>
      %c5_82 = arith.constant 5 : index
      %c0_83 = arith.constant 0 : index
      %c384_84 = arith.constant 384 : index
      %104 = vector.load %arg12[%c5_82, %c0_83, %c384_84] : memref<12x16x512xf32, #tpu.memory_space<vmem>>, vector<1x16x64xf32>
      %105 = vector.shape_cast %104 : vector<1x16x64xf32> to vector<16x64xf32>
      %106 = arith.maximumf %103, %105 : vector<16x64xf32>
      %c5_85 = arith.constant 5 : index
      %c0_86 = arith.constant 0 : index
      %c448_87 = arith.constant 448 : index
      %107 = vector.load %arg12[%c5_85, %c0_86, %c448_87] : memref<12x16x512xf32, #tpu.memory_space<vmem>>, vector<1x16x64xf32>
      %108 = vector.shape_cast %107 : vector<1x16x64xf32> to vector<16x64xf32>
      %109 = arith.maximumf %106, %108 : vector<16x64xf32>
      %c0_88 = arith.constant 0 : index
      %c0_89 = arith.constant 0 : index
      %c192_90 = arith.constant 192 : index
      %110 = vector.load %arg12[%c0_88, %c0_89, %c192_90] : memref<12x16x512xf32, #tpu.memory_space<vmem>>, vector<1x16x64xf32>
      %111 = vector.shape_cast %110 : vector<1x16x64xf32> to vector<16x64xf32>
      %112 = vector.shape_cast %109 : vector<16x64xf32> to vector<1x16x64xf32>
      tpu.vector_store %arg12[%c0_88, %c0_89, %c192_90], %112 {strides = array<i32>} : memref<12x16x512xf32, #tpu.memory_space<vmem>>, vector<1x16x64xf32>,
    } else {
    }
    return
  }
  func.func @transform_0(%arg0: i32, %arg1: memref<107xi32, #tpu.memory_space<smem>>, %arg2: memref<107xi32, #tpu.memory_space<smem>>, %arg3: memref<107xi32, #tpu.memory_space<smem>>, %arg4: memref<107xi32, #tpu.memory_space<smem>>, %arg5: memref<107xi32, #tpu.memory_space<smem>>, %arg6: memref<107xi32, #tpu.memory_space<smem>>, %arg7: memref<107xi32, #tpu.memory_space<smem>>) -> (i32, i32) {
    %c0_i32 = arith.constant 0 : i32
    %c0_i32_0 = arith.constant 0 : i32
    %c0_i32_1 = arith.constant 0 : i32
    return %c0_i32, %c0_i32_0 : i32, i32
  }
  func.func @transform_1(%arg0: i32, %arg1: memref<107xi32, #tpu.memory_space<smem>>, %arg2: memref<107xi32, #tpu.memory_space<smem>>, %arg3: memref<107xi32, #tpu.memory_space<smem>>, %arg4: memref<107xi32, #tpu.memory_space<smem>>, %arg5: memref<107xi32, #tpu.memory_space<smem>>, %arg6: memref<107xi32, #tpu.memory_space<smem>>, %arg7: memref<107xi32, #tpu.memory_space<smem>>) -> (i32, i32, i32) {
    %c0_i32 = arith.constant 0 : i32
    %c0_i32_0 = arith.constant 0 : i32
    %c0_i32_1 = arith.constant 0 : i32
    return %arg0, %c0_i32, %c0_i32_0 : i32, i32, i32
  }
  func.func @transform_2(%arg0: i32, %arg1: memref<107xi32, #tpu.memory_space<smem>>, %arg2: memref<107xi32, #tpu.memory_space<smem>>, %arg3: memref<107xi32, #tpu.memory_space<smem>>, %arg4: memref<107xi32, #tpu.memory_space<smem>>, %arg5: memref<107xi32, #tpu.memory_space<smem>>, %arg6: memref<107xi32, #tpu.memory_space<smem>>, %arg7: memref<107xi32, #tpu.memory_space<smem>>) -> (i32, i32, i32) {
    %c0_i32 = arith.constant 0 : i32
    %c0_i32_0 = arith.constant 0 : i32
    %c0_i32_1 = arith.constant 0 : i32
    return %arg0, %c0_i32, %c0_i32_0 : i32, i32, i32
  }
  func.func @transform_3(%arg0: i32, %arg1: memref<107xi32, #tpu.memory_space<smem>>, %arg2: memref<107xi32, #tpu.memory_space<smem>>, %arg3: memref<107xi32, #tpu.memory_space<smem>>, %arg4: memref<107xi32, #tpu.memory_space<smem>>, %arg5: memref<107xi32, #tpu.memory_space<smem>>, %arg6: memref<107xi32, #tpu.memory_space<smem>>, %arg7: memref<107xi32, #tpu.memory_space<smem>>) -> (i32, i32) {
    %c0_i32 = arith.constant 0 : i32
    %c0_i32_0 = arith.constant 0 : i32
    %c0_i32_1 = arith.constant 0 : i32
    return %c0_i32, %c0_i32_0 : i32, i32
  }
}

</mosaic_0001>

<llo_original>
// kernel: forward.1
$region0: #{forward.1}
  #allocation0 [shape = 'u32[]', space=smem, size = 0x4, offset = 0x4, fixed_abs, tag = 'smem constant byte address 0x4 - core index']
  #allocation1 [shape = 'u32[144,128]{1,0:T(1,128)}', space=vmem, size = 0x12000, scoped, tag = 'internal scratch']
  #allocation2 [shape = 'f32[12,16,512]{2,1,0:T(8,128)}', space=vmem, size = 0x60000, scoped, tag = 'scratch operand']
  #allocation3 [shape = 'f32[16,512]{1,0:T(8,128)}', space=vmem, size = 0x8000, scoped, tag = 'scratch operand']
  #allocation4 [shape = 's32[1]{0}', space=sflag, size = 0x4, scoped, tag = 'scoped memory for forward.1']
  #allocation5 [shape = 'u8[512]{0}', space=smem, size = 0x200, scoped, tag = 'prefetched SMEM operand 0']
  #allocation6 [shape = 'u8[512]{0}', space=smem, size = 0x200, scoped, tag = 'prefetched SMEM operand 1']
  #allocation7 [shape = 'u8[512]{0}', space=smem, size = 0x200, scoped, tag = 'prefetched SMEM operand 2']
  #allocation8 [shape = 'u8[512]{0}', space=smem, size = 0x200, scoped, tag = 'prefetched SMEM operand 3']
  #allocation9 [shape = 'u8[512]{0}', space=smem, size = 0x200, scoped, tag = 'prefetched SMEM operand 4']
  #allocation10 [shape = 'u8[512]{0}', space=smem, size = 0x200, scoped, tag = 'prefetched SMEM operand 5']
  #allocation11 [shape = 'u8[512]{0}', space=smem, size = 0x200, scoped, tag = 'prefetched SMEM operand 6']
  %s0 = inlined_call_operand.hbm [shape: s32[107], index: 0, kind: input, shape index: {}]
  %s1 = inlined_call_operand.hbm [shape: s32[107], index: 1, kind: input, shape index: {}]
  %s2 = inlined_call_operand.hbm [shape: s32[107], index: 2, kind: input, shape index: {}]
  %s3 = inlined_call_operand.hbm [shape: s32[107], index: 3, kind: input, shape index: {}]
  %s4 = inlined_call_operand.hbm [shape: s32[107], index: 4, kind: input, shape index: {}]
  %s5 = inlined_call_operand.hbm [shape: s32[107], index: 5, kind: input, shape index: {}]
  %s6 = inlined_call_operand.hbm [shape: s32[107], index: 6, kind: input, shape index: {}]
  %s7 = inlined_call_operand.vmem [shape: f32[16,2048], index: 7, kind: input, shape index: {}]
  %s8 = inlined_call_operand.hbm [shape: bf16[107,512,512], index: 8, kind: input, shape index: {}]
  %s9 = inlined_call_operand.hbm [shape: f32[107,1,512], index: 9, kind: input, shape index: {}]
  %s10 = inlined_call_operand.vmem [shape: f32[16,512], index: 10, kind: output, shape index: {}]
  %s11 = sld [smem:[#allocation0]]
  $region77: #{forward.1} parent=0
    _
  %s13 = ssub.s32 1, %s11
  %s14 = scalar_select 0, %s13, %s11
  %16 = dma.hbm_to_smem %s0, 16, [#allocation5], [#allocation4]
  %18 = dma.hbm_to_smem %s1, 16, [#allocation6], [#allocation4]
  %20 = dma.hbm_to_smem %s2, 16, [#allocation7], [#allocation4]
  %22 = dma.hbm_to_smem %s3, 16, [#allocation8], [#allocation4]
  %24 = dma.hbm_to_smem %s4, 16, [#allocation9], [#allocation4]
  %26 = dma.hbm_to_smem %s5, 16, [#allocation10], [#allocation4]
  %28 = dma.hbm_to_smem %s6, 16, [#allocation11], [#allocation4]
  %29 = dma.done [#allocation4], 112
  %30 = sfence
  $region1: #{forward.1} parent=0
    #allocation12 [shape = 'u8[1048576]{0}', space=vmem, size = 0x100000, scoped, tag = 'input window, operand 8']
    #allocation13 [shape = 's32[2]{0}', space=sflag, size = 0x8, scoped, tag = 'scoped memory for forward.1']
    #allocation14 [shape = 'u8[4096]{0}', space=vmem, size = 0x1000, scoped, tag = 'input window, operand 9']
    #allocation15 [shape = 's32[2]{0}', space=sflag, size = 0x8, scoped, tag = 'scoped memory for forward.1']
    %31 = vsyncpa [#allocation13], 0
    %s32 = scalar_lea.sflag [#allocation13], 1
    %33 = vsyncpa %s32, 0
    %34 = vsyncpa [#allocation15], 0
    %s35 = scalar_lea.sflag [#allocation15], 1
    %36 = vsyncpa %s35, 0
    loop: start=0, step=1, limit=109
    $region2: #{forward.1} parent=1 // loop_pre_header
      _
    $region3: #{forward.1} parent=1 // loop_header
      %s38 = sphi 0, %s42
      %p39 = scmp.ge.s32.totalorder %s38, 109
      %s46 = sphi 0, %s46
      %s48 = sphi 0, %s46
      %s49 = sphi 0, %s48
      %s63 = sphi 0, %s49
      %s69 = sphi 0, %s71
      %s72 = sphi 0, %s69
      %s73 = sphi 0, %s72
      %s89 = sphi 0, %s73
      %s95 = sphi 0, %s97
      %s98 = sphi 0, %s95
      %s99 = sphi 0, %s98
      %s115 = sphi 0, %s99
      %s119 = sphi 0, %s119
      %s121 = sphi 0, %s119
      %s122 = sphi 0, %s121
      %s136 = sphi 0, %s122
    $region4: #{forward.1} parent=1 // loop_header_branch
      %41 = sbr.rel (%p39) target = $region8
    $region5: #{forward.1} parent=1 // loop_body
      %s43 = ssub.s32 %s38, 1
      %s44 = ssub.s32 %s38, 2
      %s45 = sadd.s32 %s38, 1
      %s47 = sadd.s32 %s46, 1
      %p50 = scmp.eq.s32.totalorder %s38, 106
      %p51 = scmp.ne.s32.totalorder %s46, %s48
      %p52 = scmp.eq.s32.totalorder %s38, 0
      %p53 = por %p51, %p52
      %p54 = scmp.ne.s32.totalorder %s46, %s48
      %p55 = scmp.eq.s32.totalorder %s43, 106
      %p56 = por %p54, %p55
      %p57 = scmp.ne.s32.totalorder %s48, %s49
      %p58 = scmp.eq.s32.totalorder %s43, 0
      %p59 = por %p57, %p58
      %p60 = scmp.ne.s32.totalorder %s48, %s49
      %p61 = scmp.eq.s32.totalorder %s44, 106
      %p62 = por %p60, %p61
      %p64 = scmp.ne.s32.totalorder %s49, %s63
      %p65 = scmp.eq.s32.totalorder %s44, 0
      %p66 = por %p64, %p65
      %s67 = ssub.s32 %s38, %s45
      %p68 = scmp.eq.s32.totalorder %s67, 0
      %s70 = sadd.s32 %s69, 1
      %s71 = scalar_select %p68, %s69, %s70
      %p74 = pneg %p68
      %p75 = scmp.eq.s32.totalorder %s38, 106
      %p76 = por %p74, %p75
      %p77 = scmp.ne.s32.totalorder %s69, %s72
      %p78 = scmp.eq.s32.totalorder %s38, 0
      %p79 = por %p77, %p78
      %p80 = scmp.ne.s32.totalorder %s69, %s72
      %p81 = scmp.eq.s32.totalorder %s43, 106
      %p82 = por %p80, %p81
      %p83 = scmp.ne.s32.totalorder %s72, %s73
      %p84 = scmp.eq.s32.totalorder %s43, 0
      %p85 = por %p83, %p84
      %p86 = scmp.ne.s32.totalorder %s72, %s73
      %p87 = scmp.eq.s32.totalorder %s44, 106
      %p88 = por %p86, %p87
      %p90 = scmp.ne.s32.totalorder %s73, %s89
      %p91 = scmp.eq.s32.totalorder %s44, 0
      %p92 = por %p90, %p91
      %s93 = ssub.s32 %s38, %s45
      %p94 = scmp.eq.s32.totalorder %s93, 0
      %s96 = sadd.s32 %s95, 1
      %s97 = scalar_select %p94, %s95, %s96
      %p100 = pneg %p94
      %p101 = scmp.eq.s32.totalorder %s38, 106
      %p102 = por %p100, %p101
      %p103 = scmp.ne.s32.totalorder %s95, %s98
      %p104 = scmp.eq.s32.totalorder %s38, 0
      %p105 = por %p103, %p104
      %p106 = scmp.ne.s32.totalorder %s95, %s98
      %p107 = scmp.eq.s32.totalorder %s43, 106
      %p108 = por %p106, %p107
      %p109 = scmp.ne.s32.totalorder %s98, %s99
      %p110 = scmp.eq.s32.totalorder %s43, 0
      %p111 = por %p109, %p110
      %p112 = scmp.ne.s32.totalorder %s98, %s99
      %p113 = scmp.eq.s32.totalorder %s44, 106
      %p114 = por %p112, %p113
      %p116 = scmp.ne.s32.totalorder %s99, %s115
      %p117 = scmp.eq.s32.totalorder %s44, 0
      %p118 = por %p116, %p117
      %s120 = sadd.s32 %s119, 1
      %p123 = scmp.eq.s32.totalorder %s38, 106
      %p124 = scmp.ne.s32.totalorder %s119, %s121
      %p125 = scmp.eq.s32.totalorder %s38, 0
      %p126 = por %p124, %p125
      %p127 = scmp.ne.s32.totalorder %s119, %s121
      %p128 = scmp.eq.s32.totalorder %s43, 106
      %p129 = por %p127, %p128
      %p130 = scmp.ne.s32.totalorder %s121, %s122
      %p131 = scmp.eq.s32.totalorder %s43, 0
      %p132 = por %p130, %p131
      %p133 = scmp.ne.s32.totalorder %s121, %s122
      %p134 = scmp.eq.s32.totalorder %s44, 106
      %p135 = por %p133, %p134
      %p137 = scmp.ne.s32.totalorder %s122, %s136
      %p138 = scmp.eq.s32.totalorder %s44, 0
      %p139 = por %p137, %p138
      %p140 = scmp.le.s32.totalorder 1, %s38
      %p141 = scmp.lt.s32.totalorder %s38, 108
      %p142 = pnand %p140, %p141
      %p143 = pneg %p142
      // Predicated region
      $region9: #{forward.1} parent=5 // pred_check
        _
      $region10: #{forward.1} parent=5 // pred_check_branch
        %145 = sbr.rel (%p142) target = $region12
      $region11: #{forward.1} parent=5 // pred_region
        %s146 = ssub.s32 %s38, 1
        // Predicated region
        $region13: #{forward.1} parent=11 // pred_check
          %p147 = pneg %p59
        $region14: #{forward.1} parent=11 // pred_check_branch
          %149 = sbr.rel (%p147) target = $region16
        $region15: #{forward.1} parent=11 // pred_region
          _
        $region16: #{forward.1} parent=11 // pred_fallthru
          _
      $region12: #{forward.1} parent=5 // pred_fallthru
        _
      %p150 = scmp.lt.s32.totalorder %s38, 107
      // Predicated region
      $region17: #{forward.1} parent=5 // pred_check
        %p151 = pneg %p150
      $region18: #{forward.1} parent=5 // pred_check_branch
        %153 = sbr.rel (%p151) target = $region20
      $region19: #{forward.1} parent=5 // pred_region
        // Predicated region
        $region21: #{forward.1} parent=19 // pred_check
          %p154 = pneg %p79
        $region22: #{forward.1} parent=19 // pred_check_branch
          %156 = sbr.rel (%p154) target = $region24
        $region23: #{forward.1} parent=19 // pred_region
          %s157 = sand.u32 %s69, 1
          %s158 = scalar_lea.sflag [#allocation13], %s157
          %s159 = sand.u32 %s69, 1
          %s160 = smul.addr %s159, 1024
          %s161 = scalar_lea.vmem [#allocation12], %s160
          %s163 = ssub.s32 16384, 16384
          %164 = vsyncadd %s158, %s163
          %s165 = smul.addr %s38, 256
          %s166 = smul.addr %s165, 64
          %s167 = scalar_lea.hbm %s8, %s166
          %s168 = sshll.u32 %s161, 4
          %s169 = int_to_ptr.vmem [resolvable:$true] %s168
          %174 = dma.hbm_to_vmem [thread:$0]  %s167, 16384, %s169, %s158, 256, 256, 16
        $region24: #{forward.1} parent=19 // pred_fallthru
          _
        // Predicated region
        $region25: #{forward.1} parent=19 // pred_check
          %p175 = pneg %p105
        $region26: #{forward.1} parent=19 // pred_check_branch
          %177 = sbr.rel (%p175) target = $region28
        $region27: #{forward.1} parent=19 // pred_region
          %s178 = sand.u32 %s95, 1
          %s179 = scalar_lea.sflag [#allocation15], %s178
          %s180 = sand.u32 %s95, 1
          %s181 = smul.addr %s180, 4
          %s182 = scalar_lea.vmem [#allocation14], %s181
          %s184 = ssub.s32 64, 64
          %185 = vsyncadd %s179, %s184
          %s186 = smul.addr %s38, 4
          %s187 = smul.addr %s186, 16
          %s188 = scalar_lea.hbm %s9, %s187
          %s190 = sshll.u32 %s182, 4
          %s191 = int_to_ptr.vmem [resolvable:$true] %s190
          %193 = dma.hbm_to_vmem [thread:$0]  %s188, 64, %s191, %s179
        $region28: #{forward.1} parent=19 // pred_fallthru
          _
      $region20: #{forward.1} parent=5 // pred_fallthru
        _
      %p194 = scmp.le.s32.totalorder 1, %s38
      %p195 = scmp.lt.s32.totalorder %s38, 108
      %p196 = pnand %p194, %p195
      %p197 = pneg %p196
      // Predicated region
      $region29: #{forward.1} parent=5 // pred_check
        _
      $region30: #{forward.1} parent=5 // pred_check_branch
        %199 = sbr.rel (%p196) target = $region32
      $region31: #{forward.1} parent=5 // pred_region
        %s200 = ssub.s32 %s38, 1
        %s201 = sand.u32 %s72, 1
        %s202 = scalar_lea.sflag [#allocation13], %s201
        %s203 = sand.u32 %s72, 1
        %s204 = smul.addr %s203, 1024
        %s205 = scalar_lea.vmem [#allocation12], %s204
        // Predicated region
        $region33: #{forward.1} parent=31 // pred_check
          %p206 = pneg %p85
        $region34: #{forward.1} parent=31 // pred_check_branch
          %208 = sbr.rel (%p206) target = $region36
        $region35: #{forward.1} parent=31 // pred_region
          %209 = dma.done %s202, 16384
        $region36: #{forward.1} parent=31 // pred_fallthru
          _
        %s210 = sand.u32 %s98, 1
        %s211 = scalar_lea.sflag [#allocation15], %s210
        %s212 = sand.u32 %s98, 1
        %s213 = smul.addr %s212, 4
        %s214 = scalar_lea.vmem [#allocation14], %s213
        // Predicated region
        $region37: #{forward.1} parent=31 // pred_check
          %p215 = pneg %p111
        $region38: #{forward.1} parent=31 // pred_check_branch
          %217 = sbr.rel (%p215) target = $region40
        $region39: #{forward.1} parent=31 // pred_region
          %218 = dma.done %s211, 64
        $region40: #{forward.1} parent=31 // pred_fallthru
          _
        %p219 = pneg %p59
        %p220 = pneg %p56
        %s221 = sand.u32 %s72, 1
        %s222 = scalar_lea.sflag [#allocation13], %s221
        %s223 = sand.u32 %s72, 1
        %s224 = smul.addr %s223, 1024
        %s225 = scalar_lea.vmem [#allocation12], %s224
        %p226 = pneg %p85
        %p227 = pneg %p82
        %s228 = sand.u32 %s98, 1
        %s229 = scalar_lea.sflag [#allocation15], %s228
        %s230 = sand.u32 %s98, 1
        %s231 = smul.addr %s230, 4
        %s232 = scalar_lea.vmem [#allocation14], %s231
        %p233 = pneg %p111
        %p234 = pneg %p108
        %p235 = pneg %p132
        %p236 = pneg %p129
        %p237 = scmp.eq.s32.totalorder %s43, 0
        // Predicated region
        $region41: #{forward.1} parent=31 // pred_check
          %p238 = pneg %p237
        $region42: #{forward.1} parent=31 // pred_check_branch
          %240 = sbr.rel (%p238) target = $region44
        $region43: #{forward.1} parent=31 // pred_region
          %v241 = vld [vmem:[%s7] sm:$0xff]
          %v242 = vld [vmem:[%s7 + $0x8] sm:$0xff]
          %v243 = vld [vmem:[%s7 + $0x10] sm:$0xff]
          %v244 = vld [vmem:[%s7 + $0x18] sm:$0xff]
          %v245 = vld [vmem:[%s7 + $0x80] sm:$0xff]
          %v246 = vld [vmem:[%s7 + $0x88] sm:$0xff]
          %v247 = vld [vmem:[%s7 + $0x90] sm:$0xff]
          %v248 = vld [vmem:[%s7 + $0x98] sm:$0xff]
          %249 = vst [vmem:[#allocation2] sm:$0xff] %v241
          %250 = vst [vmem:[#allocation2 + $0x8] sm:$0xff] %v242
          %251 = vst [vmem:[#allocation2 + $0x10] sm:$0xff] %v243
          %252 = vst [vmem:[#allocation2 + $0x18] sm:$0xff] %v244
          %253 = vst [vmem:[#allocation2 + $0x20] sm:$0xff] %v245
          %254 = vst [vmem:[#allocation2 + $0x28] sm:$0xff] %v246
          %255 = vst [vmem:[#allocation2 + $0x30] sm:$0xff] %v247
          %256 = vst [vmem:[#allocation2 + $0x38] sm:$0xff] %v248
          %v257 = vld [vmem:[%s7 + $0x20] sm:$0xff]
          %v258 = vld [vmem:[%s7 + $0x28] sm:$0xff]
          %v259 = vld [vmem:[%s7 + $0x30] sm:$0xff]
          %v260 = vld [vmem:[%s7 + $0x38] sm:$0xff]
          %v261 = vld [vmem:[%s7 + $0xa0] sm:$0xff]
          %v262 = vld [vmem:[%s7 + $0xa8] sm:$0xff]
          %v263 = vld [vmem:[%s7 + $0xb0] sm:$0xff]
          %v264 = vld [vmem:[%s7 + $0xb8] sm:$0xff]
          %s265 = scalar_lea.vmem [#allocation2], 64
          %266 = vst [vmem:[%s265] sm:$0xff] %v257
          %267 = vst [vmem:[%s265 + $0x8] sm:$0xff] %v258
          %268 = vst [vmem:[%s265 + $0x10] sm:$0xff] %v259
          %269 = vst [vmem:[%s265 + $0x18] sm:$0xff] %v260
          %270 = vst [vmem:[%s265 + $0x20] sm:$0xff] %v261
          %271 = vst [vmem:[%s265 + $0x28] sm:$0xff] %v262
          %272 = vst [vmem:[%s265 + $0x30] sm:$0xff] %v263
          %273 = vst [vmem:[%s265 + $0x38] sm:$0xff] %v264
          %v274 = vld [vmem:[%s7 + $0x40] sm:$0xff]
          %v275 = vld [vmem:[%s7 + $0x48] sm:$0xff]
          %v276 = vld [vmem:[%s7 + $0x50] sm:$0xff]
          %v277 = vld [vmem:[%s7 + $0x58] sm:$0xff]
          %v278 = vld [vmem:[%s7 + $0xc0] sm:$0xff]
          %v279 = vld [vmem:[%s7 + $0xc8] sm:$0xff]
          %v280 = vld [vmem:[%s7 + $0xd0] sm:$0xff]
          %v281 = vld [vmem:[%s7 + $0xd8] sm:$0xff]
          %s282 = scalar_lea.vmem [#allocation2], 128
          %283 = vst [vmem:[%s282] sm:$0xff] %v274
          %284 = vst [vmem:[%s282 + $0x8] sm:$0xff] %v275
          %285 = vst [vmem:[%s282 + $0x10] sm:$0xff] %v276
          %286 = vst [vmem:[%s282 + $0x18] sm:$0xff] %v277
          %287 = vst [vmem:[%s282 + $0x20] sm:$0xff] %v278
          %288 = vst [vmem:[%s282 + $0x28] sm:$0xff] %v279
          %289 = vst [vmem:[%s282 + $0x30] sm:$0xff] %v280
          %290 = vst [vmem:[%s282 + $0x38] sm:$0xff] %v281
          %v291 = vld [vmem:[%s7 + $0x60] sm:$0xff]
          %v292 = vld [vmem:[%s7 + $0x68] sm:$0xff]
          %v293 = vld [vmem:[%s7 + $0x70] sm:$0xff]
          %v294 = vld [vmem:[%s7 + $0x78] sm:$0xff]
          %v295 = vld [vmem:[%s7 + $0xe0] sm:$0xff]
          %v296 = vld [vmem:[%s7 + $0xe8] sm:$0xff]
          %v297 = vld [vmem:[%s7 + $0xf0] sm:$0xff]
          %v298 = vld [vmem:[%s7 + $0xf8] sm:$0xff]
          %s299 = scalar_lea.vmem [#allocation2], 192
          %300 = vst [vmem:[%s299] sm:$0xff] %v291
          %301 = vst [vmem:[%s299 + $0x8] sm:$0xff] %v292
          %302 = vst [vmem:[%s299 + $0x10] sm:$0xff] %v293
          %303 = vst [vmem:[%s299 + $0x18] sm:$0xff] %v294
          %304 = vst [vmem:[%s299 + $0x20] sm:$0xff] %v295
          %305 = vst [vmem:[%s299 + $0x28] sm:$0xff] %v296
          %306 = vst [vmem:[%s299 + $0x30] sm:$0xff] %v297
          %307 = vst [vmem:[%s299 + $0x38] sm:$0xff] %v298
        $region44: #{forward.1} parent=31 // pred_fallthru
          _
        %s308 = sld [smem:[#allocation5 + %s43]]
        %s309 = sld [smem:[#allocation6 + %s43]]
        %s310 = sld [smem:[#allocation11 + %s43]]
        %p311 = scmp.eq.s32.totalorder %s310, 1
        // Predicated region
        $region45: #{forward.1} parent=31 // pred_check
          %p312 = pneg %p311
        $region46: #{forward.1} parent=31 // pred_check_branch
          %314 = sbr.rel (%p312) target = $region48
        $region47: #{forward.1} parent=31 // pred_region
          %315 = vst [vmem:[#allocation3] sm:$0xff] 0.0
          %316 = vst [vmem:[#allocation3 + $0x8] sm:$0xff] 0.0
          %317 = vst [vmem:[#allocation3 + $0x10] sm:$0xff] 0.0
          %318 = vst [vmem:[#allocation3 + $0x18] sm:$0xff] 0.0
          %319 = vst [vmem:[#allocation3 + $0x20] sm:$0xff] 0.0
          %320 = vst [vmem:[#allocation3 + $0x28] sm:$0xff] 0.0
          %321 = vst [vmem:[#allocation3 + $0x30] sm:$0xff] 0.0
          %322 = vst [vmem:[#allocation3 + $0x38] sm:$0xff] 0.0
        $region48: #{forward.1} parent=31 // pred_fallthru
          _
        %s323 = smul.u32 %s308, 8
        %s324 = smul.addr %s323, 8
        %s325 = scalar_lea.vmem [#allocation2], %s324
        %v326 = vld [vmem:[%s325] sm:$0xff]
        %v327 = vld [vmem:[%s325 + $0x8] sm:$0xff]
        %v328 = vld [vmem:[%s325 + $0x10] sm:$0xff]
        %v329 = vld [vmem:[%s325 + $0x18] sm:$0xff]
        %v330 = vld [vmem:[%s325 + $0x20] sm:$0xff]
        %v331 = vld [vmem:[%s325 + $0x28] sm:$0xff]
        %v332 = vld [vmem:[%s325 + $0x30] sm:$0xff]
        %v333 = vld [vmem:[%s325 + $0x38] sm:$0xff]
        %v334 = vpack.c.bf16 %v330, %v326
        %v335 = vpack.c.bf16 %v331, %v327
        %v336 = vpack.c.bf16 %v332, %v328
        %v337 = vpack.c.bf16 %v333, %v329
        %v338 = vld [vmem:[#allocation3] sm:$0xff]
        %v339 = vld [vmem:[#allocation3 + $0x8] sm:$0xff]
        %v340 = vld [vmem:[#allocation3 + $0x10] sm:$0xff]
        %v341 = vld [vmem:[#allocation3 + $0x18] sm:$0xff]
        %v342 = vld [vmem:[#allocation3 + $0x20] sm:$0xff]
        %v343 = vld [vmem:[#allocation3 + $0x28] sm:$0xff]
        %v344 = vld [vmem:[#allocation3 + $0x30] sm:$0xff]
        %v345 = vld [vmem:[#allocation3 + $0x38] sm:$0xff]
        %v346 = vld [vmem:[%s205] sm:$0xff]
        %v347 = vld [vmem:[%s205 + $0x8] sm:$0xff]
        %v348 = vld [vmem:[%s205 + $0x10] sm:$0xff]
        %v349 = vld [vmem:[%s205 + $0x18] sm:$0xff]
        %v350 = vld [vmem:[%s205 + $0x20] sm:$0xff]
        %v351 = vld [vmem:[%s205 + $0x28] sm:$0xff]
        %v352 = vld [vmem:[%s205 + $0x30] sm:$0xff]
        %v353 = vld [vmem:[%s205 + $0x38] sm:$0xff]
        %v354 = vld [vmem:[%s205 + $0x40] sm:$0xff]
        %v355 = vld [vmem:[%s205 + $0x48] sm:$0xff]
        %v356 = vld [vmem:[%s205 + $0x50] sm:$0xff]
        %v357 = vld [vmem:[%s205 + $0x58] sm:$0xff]
        %v358 = vld [vmem:[%s205 + $0x60] sm:$0xff]
        %v359 = vld [vmem:[%s205 + $0x68] sm:$0xff]
        %v360 = vld [vmem:[%s205 + $0x70] sm:$0xff]
        %v361 = vld [vmem:[%s205 + $0x78] sm:$0xff]
        %v362 = vld [vmem:[%s205 + $0x80] sm:$0xff]
        %v363 = vld [vmem:[%s205 + $0x88] sm:$0xff]
        %v364 = vld [vmem:[%s205 + $0x90] sm:$0xff]
        %v365 = vld [vmem:[%s205 + $0x98] sm:$0xff]
        %v366 = vld [vmem:[%s205 + $0xa0] sm:$0xff]
        %v367 = vld [vmem:[%s205 + $0xa8] sm:$0xff]
        %v368 = vld [vmem:[%s205 + $0xb0] sm:$0xff]
        %v369 = vld [vmem:[%s205 + $0xb8] sm:$0xff]
        %v370 = vld [vmem:[%s205 + $0xc0] sm:$0xff]
        %v371 = vld [vmem:[%s205 + $0xc8] sm:$0xff]
        %v372 = vld [vmem:[%s205 + $0xd0] sm:$0xff]
        %v373 = vld [vmem:[%s205 + $0xd8] sm:$0xff]
        %v374 = vld [vmem:[%s205 + $0xe0] sm:$0xff]
        %v375 = vld [vmem:[%s205 + $0xe8] sm:$0xff]
        %v376 = vld [vmem:[%s205 + $0xf0] sm:$0xff]
        %v377 = vld [vmem:[%s205 + $0xf8] sm:$0xff]
        %v378 = vld [vmem:[%s205 + $0x100] sm:$0xff]
        %v379 = vld [vmem:[%s205 + $0x108] sm:$0xff]
        %v380 = vld [vmem:[%s205 + $0x110] sm:$0xff]
        %v381 = vld [vmem:[%s205 + $0x118] sm:$0xff]
        %v382 = vld [vmem:[%s205 + $0x120] sm:$0xff]
        %v383 = vld [vmem:[%s205 + $0x128] sm:$0xff]
        %v384 = vld [vmem:[%s205 + $0x130] sm:$0xff]
        %v385 = vld [vmem:[%s205 + $0x138] sm:$0xff]
        %v386 = vld [vmem:[%s205 + $0x140] sm:$0xff]
        %v387 = vld [vmem:[%s205 + $0x148] sm:$0xff]
        %v388 = vld [vmem:[%s205 + $0x150] sm:$0xff]
        %v389 = vld [vmem:[%s205 + $0x158] sm:$0xff]
        %v390 = vld [vmem:[%s205 + $0x160] sm:$0xff]
        %v391 = vld [vmem:[%s205 + $0x168] sm:$0xff]
        %v392 = vld [vmem:[%s205 + $0x170] sm:$0xff]
        %v393 = vld [vmem:[%s205 + $0x178] sm:$0xff]
        %v394 = vld [vmem:[%s205 + $0x180] sm:$0xff]
        %v395 = vld [vmem:[%s205 + $0x188] sm:$0xff]
        %v396 = vld [vmem:[%s205 + $0x190] sm:$0xff]
        %v397 = vld [vmem:[%s205 + $0x198] sm:$0xff]
        %v398 = vld [vmem:[%s205 + $0x1a0] sm:$0xff]
        %v399 = vld [vmem:[%s205 + $0x1a8] sm:$0xff]
        %v400 = vld [vmem:[%s205 + $0x1b0] sm:$0xff]
        %v401 = vld [vmem:[%s205 + $0x1b8] sm:$0xff]
        %v402 = vld [vmem:[%s205 + $0x1c0] sm:$0xff]
        %v403 = vld [vmem:[%s205 + $0x1c8] sm:$0xff]
        %v404 = vld [vmem:[%s205 + $0x1d0] sm:$0xff]
        %v405 = vld [vmem:[%s205 + $0x1d8] sm:$0xff]
        %v406 = vld [vmem:[%s205 + $0x1e0] sm:$0xff]
        %v407 = vld [vmem:[%s205 + $0x1e8] sm:$0xff]
        %v408 = vld [vmem:[%s205 + $0x1f0] sm:$0xff]
        %v409 = vld [vmem:[%s205 + $0x1f8] sm:$0xff]
        %v410 = vld [vmem:[%s205 + $0x200] sm:$0xff]
        %v411 = vld [vmem:[%s205 + $0x208] sm:$0xff]
        %v412 = vld [vmem:[%s205 + $0x210] sm:$0xff]
        %v413 = vld [vmem:[%s205 + $0x218] sm:$0xff]
        %v414 = vld [vmem:[%s205 + $0x220] sm:$0xff]
        %v415 = vld [vmem:[%s205 + $0x228] sm:$0xff]
        %v416 = vld [vmem:[%s205 + $0x230] sm:$0xff]
        %v417 = vld [vmem:[%s205 + $0x238] sm:$0xff]
        %v418 = vld [vmem:[%s205 + $0x240] sm:$0xff]
        %v419 = vld [vmem:[%s205 + $0x248] sm:$0xff]
        %v420 = vld [vmem:[%s205 + $0x250] sm:$0xff]
        %v421 = vld [vmem:[%s205 + $0x258] sm:$0xff]
        %v422 = vld [vmem:[%s205 + $0x260] sm:$0xff]
        %v423 = vld [vmem:[%s205 + $0x268] sm:$0xff]
        %v424 = vld [vmem:[%s205 + $0x270] sm:$0xff]
        %v425 = vld [vmem:[%s205 + $0x278] sm:$0xff]
        %v426 = vld [vmem:[%s205 + $0x280] sm:$0xff]
        %v427 = vld [vmem:[%s205 + $0x288] sm:$0xff]
        %v428 = vld [vmem:[%s205 + $0x290] sm:$0xff]
        %v429 = vld [vmem:[%s205 + $0x298] sm:$0xff]
        %v430 = vld [vmem:[%s205 + $0x2a0] sm:$0xff]
        %v431 = vld [vmem:[%s205 + $0x2a8] sm:$0xff]
        %v432 = vld [vmem:[%s205 + $0x2b0] sm:$0xff]
        %v433 = vld [vmem:[%s205 + $0x2b8] sm:$0xff]
        %v434 = vld [vmem:[%s205 + $0x2c0] sm:$0xff]
        %v435 = vld [vmem:[%s205 + $0x2c8] sm:$0xff]
        %v436 = vld [vmem:[%s205 + $0x2d0] sm:$0xff]
        %v437 = vld [vmem:[%s205 + $0x2d8] sm:$0xff]
        %v438 = vld [vmem:[%s205 + $0x2e0] sm:$0xff]
        %v439 = vld [vmem:[%s205 + $0x2e8] sm:$0xff]
        %v440 = vld [vmem:[%s205 + $0x2f0] sm:$0xff]
        %v441 = vld [vmem:[%s205 + $0x2f8] sm:$0xff]
        %v442 = vld [vmem:[%s205 + $0x300] sm:$0xff]
        %v443 = vld [vmem:[%s205 + $0x308] sm:$0xff]
        %v444 = vld [vmem:[%s205 + $0x310] sm:$0xff]
        %v445 = vld [vmem:[%s205 + $0x318] sm:$0xff]
        %v446 = vld [vmem:[%s205 + $0x320] sm:$0xff]
        %v447 = vld [vmem:[%s205 + $0x328] sm:$0xff]
        %v448 = vld [vmem:[%s205 + $0x330] sm:$0xff]
        %v449 = vld [vmem:[%s205 + $0x338] sm:$0xff]
        %v450 = vld [vmem:[%s205 + $0x340] sm:$0xff]
        %v451 = vld [vmem:[%s205 + $0x348] sm:$0xff]
        %v452 = vld [vmem:[%s205 + $0x350] sm:$0xff]
        %v453 = vld [vmem:[%s205 + $0x358] sm:$0xff]
        %v454 = vld [vmem:[%s205 + $0x360] sm:$0xff]
        %v455 = vld [vmem:[%s205 + $0x368] sm:$0xff]
        %v456 = vld [vmem:[%s205 + $0x370] sm:$0xff]
        %v457 = vld [vmem:[%s205 + $0x378] sm:$0xff]
        %v458 = vld [vmem:[%s205 + $0x380] sm:$0xff]
        %v459 = vld [vmem:[%s205 + $0x388] sm:$0xff]
        %v460 = vld [vmem:[%s205 + $0x390] sm:$0xff]
        %v461 = vld [vmem:[%s205 + $0x398] sm:$0xff]
        %v462 = vld [vmem:[%s205 + $0x3a0] sm:$0xff]
        %v463 = vld [vmem:[%s205 + $0x3a8] sm:$0xff]
        %v464 = vld [vmem:[%s205 + $0x3b0] sm:$0xff]
        %v465 = vld [vmem:[%s205 + $0x3b8] sm:$0xff]
        %v466 = vld [vmem:[%s205 + $0x3c0] sm:$0xff]
        %v467 = vld [vmem:[%s205 + $0x3c8] sm:$0xff]
        %v468 = vld [vmem:[%s205 + $0x3d0] sm:$0xff]
        %v469 = vld [vmem:[%s205 + $0x3d8] sm:$0xff]
        %v470 = vld [vmem:[%s205 + $0x3e0] sm:$0xff]
        %v471 = vld [vmem:[%s205 + $0x3e8] sm:$0xff]
        %v472 = vld [vmem:[%s205 + $0x3f0] sm:$0xff]
        %v473 = vld [vmem:[%s205 + $0x3f8] sm:$0xff]
        %v602 = vunpack.c.l.b16 %v346
        %v603 = vunpack.c.h.b16 %v346
        %v604 = vunpack.c.l.b16 %v347
        %v605 = vunpack.c.h.b16 %v347
        %v606 = vunpack.c.l.b16 %v348
        %v607 = vunpack.c.h.b16 %v348
        %v608 = vunpack.c.l.b16 %v349
        %v609 = vunpack.c.h.b16 %v349
        %v610 = vunpack.c.l.b16 %v350
        %v611 = vunpack.c.h.b16 %v350
        %v612 = vunpack.c.l.b16 %v351
        %v613 = vunpack.c.h.b16 %v351
        %v614 = vunpack.c.l.b16 %v352
        %v615 = vunpack.c.h.b16 %v352
        %v616 = vunpack.c.l.b16 %v353
        %v617 = vunpack.c.h.b16 %v353
        %v618 = vunpack.c.l.b16 %v354
        %v619 = vunpack.c.h.b16 %v354
        %v620 = vunpack.c.l.b16 %v355
        %v621 = vunpack.c.h.b16 %v355
        %v622 = vunpack.c.l.b16 %v356
        %v623 = vunpack.c.h.b16 %v356
        %v624 = vunpack.c.l.b16 %v357
        %v625 = vunpack.c.h.b16 %v357
        %v626 = vunpack.c.l.b16 %v358
        %v627 = vunpack.c.h.b16 %v358
        %v628 = vunpack.c.l.b16 %v359
        %v629 = vunpack.c.h.b16 %v359
        %v630 = vunpack.c.l.b16 %v360
        %v631 = vunpack.c.h.b16 %v360
        %v632 = vunpack.c.l.b16 %v361
        %v633 = vunpack.c.h.b16 %v361
        %v634 = vunpack.c.l.b16 %v362
        %v635 = vunpack.c.h.b16 %v362
        %v636 = vunpack.c.l.b16 %v363
        %v637 = vunpack.c.h.b16 %v363
        %v638 = vunpack.c.l.b16 %v364
        %v639 = vunpack.c.h.b16 %v364
        %v640 = vunpack.c.l.b16 %v365
        %v641 = vunpack.c.h.b16 %v365
        %v642 = vunpack.c.l.b16 %v366
        %v643 = vunpack.c.h.b16 %v366
        %v644 = vunpack.c.l.b16 %v367
        %v645 = vunpack.c.h.b16 %v367
        %v646 = vunpack.c.l.b16 %v368
        %v647 = vunpack.c.h.b16 %v368
        %v648 = vunpack.c.l.b16 %v369
        %v649 = vunpack.c.h.b16 %v369
        %v650 = vunpack.c.l.b16 %v370
        %v651 = vunpack.c.h.b16 %v370
        %v652 = vunpack.c.l.b16 %v371
        %v653 = vunpack.c.h.b16 %v371
        %v654 = vunpack.c.l.b16 %v372
        %v655 = vunpack.c.h.b16 %v372
        %v656 = vunpack.c.l.b16 %v373
        %v657 = vunpack.c.h.b16 %v373
        %v658 = vunpack.c.l.b16 %v374
        %v659 = vunpack.c.h.b16 %v374
        %v660 = vunpack.c.l.b16 %v375
        %v661 = vunpack.c.h.b16 %v375
        %v662 = vunpack.c.l.b16 %v376
        %v663 = vunpack.c.h.b16 %v376
        %v664 = vunpack.c.l.b16 %v377
        %v665 = vunpack.c.h.b16 %v377
        %v666 = vunpack.c.l.b16 %v378
        %v667 = vunpack.c.h.b16 %v378
        %v668 = vunpack.c.l.b16 %v379
        %v669 = vunpack.c.h.b16 %v379
        %v670 = vunpack.c.l.b16 %v380
        %v671 = vunpack.c.h.b16 %v380
        %v672 = vunpack.c.l.b16 %v381
        %v673 = vunpack.c.h.b16 %v381
        %v674 = vunpack.c.l.b16 %v382
        %v675 = vunpack.c.h.b16 %v382
        %v676 = vunpack.c.l.b16 %v383
        %v677 = vunpack.c.h.b16 %v383
        %v678 = vunpack.c.l.b16 %v384
        %v679 = vunpack.c.h.b16 %v384
        %v680 = vunpack.c.l.b16 %v385
        %v681 = vunpack.c.h.b16 %v385
        %v682 = vunpack.c.l.b16 %v386
        %v683 = vunpack.c.h.b16 %v386
        %v684 = vunpack.c.l.b16 %v387
        %v685 = vunpack.c.h.b16 %v387
        %v686 = vunpack.c.l.b16 %v388
        %v687 = vunpack.c.h.b16 %v388
        %v688 = vunpack.c.l.b16 %v389
        %v689 = vunpack.c.h.b16 %v389
        %v690 = vunpack.c.l.b16 %v390
        %v691 = vunpack.c.h.b16 %v390
        %v692 = vunpack.c.l.b16 %v391
        %v693 = vunpack.c.h.b16 %v391
        %v694 = vunpack.c.l.b16 %v392
        %v695 = vunpack.c.h.b16 %v392
        %v696 = vunpack.c.l.b16 %v393
        %v697 = vunpack.c.h.b16 %v393
        %v698 = vunpack.c.l.b16 %v394
        %v699 = vunpack.c.h.b16 %v394
        %v700 = vunpack.c.l.b16 %v395
        %v701 = vunpack.c.h.b16 %v395
        %v702 = vunpack.c.l.b16 %v396
        %v703 = vunpack.c.h.b16 %v396
        %v704 = vunpack.c.l.b16 %v397
        %v705 = vunpack.c.h.b16 %v397
        %v706 = vunpack.c.l.b16 %v398
        %v707 = vunpack.c.h.b16 %v398
        %v708 = vunpack.c.l.b16 %v399
        %v709 = vunpack.c.h.b16 %v399
        %v710 = vunpack.c.l.b16 %v400
        %v711 = vunpack.c.h.b16 %v400
        %v712 = vunpack.c.l.b16 %v401
        %v713 = vunpack.c.h.b16 %v401
        %v714 = vunpack.c.l.b16 %v402
        %v715 = vunpack.c.h.b16 %v402
        %v716 = vunpack.c.l.b16 %v403
        %v717 = vunpack.c.h.b16 %v403
        %v718 = vunpack.c.l.b16 %v404
        %v719 = vunpack.c.h.b16 %v404
        %v720 = vunpack.c.l.b16 %v405
        %v721 = vunpack.c.h.b16 %v405
        %v722 = vunpack.c.l.b16 %v406
        %v723 = vunpack.c.h.b16 %v406
        %v724 = vunpack.c.l.b16 %v407
        %v725 = vunpack.c.h.b16 %v407
        %v726 = vunpack.c.l.b16 %v408
        %v727 = vunpack.c.h.b16 %v408
        %v728 = vunpack.c.l.b16 %v409
        %v729 = vunpack.c.h.b16 %v409
        %v730 = vunpack.c.l.b16 %v410
        %v731 = vunpack.c.h.b16 %v410
        %v732 = vunpack.c.l.b16 %v411
        %v733 = vunpack.c.h.b16 %v411
        %v734 = vunpack.c.l.b16 %v412
        %v735 = vunpack.c.h.b16 %v412
        %v736 = vunpack.c.l.b16 %v413
        %v737 = vunpack.c.h.b16 %v413
        %v738 = vunpack.c.l.b16 %v414
        %v739 = vunpack.c.h.b16 %v414
        %v740 = vunpack.c.l.b16 %v415
        %v741 = vunpack.c.h.b16 %v415
        %v742 = vunpack.c.l.b16 %v416
        %v743 = vunpack.c.h.b16 %v416
        %v744 = vunpack.c.l.b16 %v417
        %v745 = vunpack.c.h.b16 %v417
        %v746 = vunpack.c.l.b16 %v418
        %v747 = vunpack.c.h.b16 %v418
        %v748 = vunpack.c.l.b16 %v419
        %v749 = vunpack.c.h.b16 %v419
        %v750 = vunpack.c.l.b16 %v420
        %v751 = vunpack.c.h.b16 %v420
        %v752 = vunpack.c.l.b16 %v421
        %v753 = vunpack.c.h.b16 %v421
        %v754 = vunpack.c.l.b16 %v422
        %v755 = vunpack.c.h.b16 %v422
        %v756 = vunpack.c.l.b16 %v423
        %v757 = vunpack.c.h.b16 %v423
        %v758 = vunpack.c.l.b16 %v424
        %v759 = vunpack.c.h.b16 %v424
        %v760 = vunpack.c.l.b16 %v425
        %v761 = vunpack.c.h.b16 %v425
        %v762 = vunpack.c.l.b16 %v426
        %v763 = vunpack.c.h.b16 %v426
        %v764 = vunpack.c.l.b16 %v427
        %v765 = vunpack.c.h.b16 %v427
        %v766 = vunpack.c.l.b16 %v428
        %v767 = vunpack.c.h.b16 %v428
        %v768 = vunpack.c.l.b16 %v429
        %v769 = vunpack.c.h.b16 %v429
        %v770 = vunpack.c.l.b16 %v430
        %v771 = vunpack.c.h.b16 %v430
        %v772 = vunpack.c.l.b16 %v431
        %v773 = vunpack.c.h.b16 %v431
        %v774 = vunpack.c.l.b16 %v432
        %v775 = vunpack.c.h.b16 %v432
        %v776 = vunpack.c.l.b16 %v433
        %v777 = vunpack.c.h.b16 %v433
        %v778 = vunpack.c.l.b16 %v434
        %v779 = vunpack.c.h.b16 %v434
        %v780 = vunpack.c.l.b16 %v435
        %v781 = vunpack.c.h.b16 %v435
        %v782 = vunpack.c.l.b16 %v436
        %v783 = vunpack.c.h.b16 %v436
        %v784 = vunpack.c.l.b16 %v437
        %v785 = vunpack.c.h.b16 %v437
        %v786 = vunpack.c.l.b16 %v438
        %v787 = vunpack.c.h.b16 %v438
        %v788 = vunpack.c.l.b16 %v439
        %v789 = vunpack.c.h.b16 %v439
        %v790 = vunpack.c.l.b16 %v440
        %v791 = vunpack.c.h.b16 %v440
        %v792 = vunpack.c.l.b16 %v441
        %v793 = vunpack.c.h.b16 %v441
        %v794 = vunpack.c.l.b16 %v442
        %v795 = vunpack.c.h.b16 %v442
        %v796 = vunpack.c.l.b16 %v443
        %v797 = vunpack.c.h.b16 %v443
        %v798 = vunpack.c.l.b16 %v444
        %v799 = vunpack.c.h.b16 %v444
        %v800 = vunpack.c.l.b16 %v445
        %v801 = vunpack.c.h.b16 %v445
        %v802 = vunpack.c.l.b16 %v446
        %v803 = vunpack.c.h.b16 %v446
        %v804 = vunpack.c.l.b16 %v447
        %v805 = vunpack.c.h.b16 %v447
        %v806 = vunpack.c.l.b16 %v448
        %v807 = vunpack.c.h.b16 %v448
        %v808 = vunpack.c.l.b16 %v449
        %v809 = vunpack.c.h.b16 %v449
        %v810 = vunpack.c.l.b16 %v450
        %v811 = vunpack.c.h.b16 %v450
        %v812 = vunpack.c.l.b16 %v451
        %v813 = vunpack.c.h.b16 %v451
        %v814 = vunpack.c.l.b16 %v452
        %v815 = vunpack.c.h.b16 %v452
        %v816 = vunpack.c.l.b16 %v453
        %v817 = vunpack.c.h.b16 %v453
        %v818 = vunpack.c.l.b16 %v454
        %v819 = vunpack.c.h.b16 %v454
        %v820 = vunpack.c.l.b16 %v455
        %v821 = vunpack.c.h.b16 %v455
        %v822 = vunpack.c.l.b16 %v456
        %v823 = vunpack.c.h.b16 %v456
        %v824 = vunpack.c.l.b16 %v457
        %v825 = vunpack.c.h.b16 %v457
        %v826 = vunpack.c.l.b16 %v458
        %v827 = vunpack.c.h.b16 %v458
        %v828 = vunpack.c.l.b16 %v459
        %v829 = vunpack.c.h.b16 %v459
        %v830 = vunpack.c.l.b16 %v460
        %v831 = vunpack.c.h.b16 %v460
        %v832 = vunpack.c.l.b16 %v461
        %v833 = vunpack.c.h.b16 %v461
        %v834 = vunpack.c.l.b16 %v462
        %v835 = vunpack.c.h.b16 %v462
        %v836 = vunpack.c.l.b16 %v463
        %v837 = vunpack.c.h.b16 %v463
        %v838 = vunpack.c.l.b16 %v464
        %v839 = vunpack.c.h.b16 %v464
        %v840 = vunpack.c.l.b16 %v465
        %v841 = vunpack.c.h.b16 %v465
        %v842 = vunpack.c.l.b16 %v466
        %v843 = vunpack.c.h.b16 %v466
        %v844 = vunpack.c.l.b16 %v467
        %v845 = vunpack.c.h.b16 %v467
        %v846 = vunpack.c.l.b16 %v468
        %v847 = vunpack.c.h.b16 %v468
        %v848 = vunpack.c.l.b16 %v469
        %v849 = vunpack.c.h.b16 %v469
        %v850 = vunpack.c.l.b16 %v470
        %v851 = vunpack.c.h.b16 %v470
        %v852 = vunpack.c.l.b16 %v471
        %v853 = vunpack.c.h.b16 %v471
        %v854 = vunpack.c.l.b16 %v472
        %v855 = vunpack.c.h.b16 %v472
        %v856 = vunpack.c.l.b16 %v473
        %v857 = vunpack.c.h.b16 %v473
        %v858 = vpack.c.b16 %v606, %v602
        %v859 = vpack.c.b16 %v607, %v603
        %v860 = vpack.c.b16 %v608, %v604
        %v861 = vpack.c.b16 %v609, %v605
        %v862 = vpack.c.b16 %v614, %v610
        %v863 = vpack.c.b16 %v615, %v611
        %v864 = vpack.c.b16 %v616, %v612
        %v865 = vpack.c.b16 %v617, %v613
        %v866 = vpack.c.b16 %v622, %v618
        %v867 = vpack.c.b16 %v623, %v619
        %v868 = vpack.c.b16 %v624, %v620
        %v869 = vpack.c.b16 %v625, %v621
        %v870 = vpack.c.b16 %v630, %v626
        %v871 = vpack.c.b16 %v631, %v627
        %v872 = vpack.c.b16 %v632, %v628
        %v873 = vpack.c.b16 %v633, %v629
        %v874 = vpack.c.b16 %v638, %v634
        %v875 = vpack.c.b16 %v639, %v635
        %v876 = vpack.c.b16 %v640, %v636
        %v877 = vpack.c.b16 %v641, %v637
        %v878 = vpack.c.b16 %v646, %v642
        %v879 = vpack.c.b16 %v647, %v643
        %v880 = vpack.c.b16 %v648, %v644
        %v881 = vpack.c.b16 %v649, %v645
        %v882 = vpack.c.b16 %v654, %v650
        %v883 = vpack.c.b16 %v655, %v651
        %v884 = vpack.c.b16 %v656, %v652
        %v885 = vpack.c.b16 %v657, %v653
        %v886 = vpack.c.b16 %v662, %v658
        %v887 = vpack.c.b16 %v663, %v659
        %v888 = vpack.c.b16 %v664, %v660
        %v889 = vpack.c.b16 %v665, %v661
        %v890 = vpack.c.b16 %v670, %v666
        %v891 = vpack.c.b16 %v671, %v667
        %v892 = vpack.c.b16 %v672, %v668
        %v893 = vpack.c.b16 %v673, %v669
        %v894 = vpack.c.b16 %v678, %v674
        %v895 = vpack.c.b16 %v679, %v675
        %v896 = vpack.c.b16 %v680, %v676
        %v897 = vpack.c.b16 %v681, %v677
        %v898 = vpack.c.b16 %v686, %v682
        %v899 = vpack.c.b16 %v687, %v683
        %v900 = vpack.c.b16 %v688, %v684
        %v901 = vpack.c.b16 %v689, %v685
        %v902 = vpack.c.b16 %v694, %v690
        %v903 = vpack.c.b16 %v695, %v691
        %v904 = vpack.c.b16 %v696, %v692
        %v905 = vpack.c.b16 %v697, %v693
        %v906 = vpack.c.b16 %v702, %v698
        %v907 = vpack.c.b16 %v703, %v699
        %v908 = vpack.c.b16 %v704, %v700
        %v909 = vpack.c.b16 %v705, %v701
        %v910 = vpack.c.b16 %v710, %v706
        %v911 = vpack.c.b16 %v711, %v707
        %v912 = vpack.c.b16 %v712, %v708
        %v913 = vpack.c.b16 %v713, %v709
        %v914 = vpack.c.b16 %v718, %v714
        %v915 = vpack.c.b16 %v719, %v715
        %v916 = vpack.c.b16 %v720, %v716
        %v917 = vpack.c.b16 %v721, %v717
        %v918 = vpack.c.b16 %v726, %v722
        %v919 = vpack.c.b16 %v727, %v723
        %v920 = vpack.c.b16 %v728, %v724
        %v921 = vpack.c.b16 %v729, %v725
        %v922 = vpack.c.b16 %v734, %v730
        %v923 = vpack.c.b16 %v735, %v731
        %v924 = vpack.c.b16 %v736, %v732
        %v925 = vpack.c.b16 %v737, %v733
        %v926 = vpack.c.b16 %v742, %v738
        %v927 = vpack.c.b16 %v743, %v739
        %v928 = vpack.c.b16 %v744, %v740
        %v929 = vpack.c.b16 %v745, %v741
        %v930 = vpack.c.b16 %v750, %v746
        %v931 = vpack.c.b16 %v751, %v747
        %v932 = vpack.c.b16 %v752, %v748
        %v933 = vpack.c.b16 %v753, %v749
        %v934 = vpack.c.b16 %v758, %v754
        %v935 = vpack.c.b16 %v759, %v755
        %v936 = vpack.c.b16 %v760, %v756
        %v937 = vpack.c.b16 %v761, %v757
        %v938 = vpack.c.b16 %v766, %v762
        %v939 = vpack.c.b16 %v767, %v763
        %v940 = vpack.c.b16 %v768, %v764
        %v941 = vpack.c.b16 %v769, %v765
        %v942 = vpack.c.b16 %v774, %v770
        %v943 = vpack.c.b16 %v775, %v771
        %v944 = vpack.c.b16 %v776, %v772
        %v945 = vpack.c.b16 %v777, %v773
        %v946 = vpack.c.b16 %v782, %v778
        %v947 = vpack.c.b16 %v783, %v779
        %v948 = vpack.c.b16 %v784, %v780
        %v949 = vpack.c.b16 %v785, %v781
        %v950 = vpack.c.b16 %v790, %v786
        %v951 = vpack.c.b16 %v791, %v787
        %v952 = vpack.c.b16 %v792, %v788
        %v953 = vpack.c.b16 %v793, %v789
        %v954 = vpack.c.b16 %v798, %v794
        %v955 = vpack.c.b16 %v799, %v795
        %v956 = vpack.c.b16 %v800, %v796
        %v957 = vpack.c.b16 %v801, %v797
        %v958 = vpack.c.b16 %v806, %v802
        %v959 = vpack.c.b16 %v807, %v803
        %v960 = vpack.c.b16 %v808, %v804
        %v961 = vpack.c.b16 %v809, %v805
        %v962 = vpack.c.b16 %v814, %v810
        %v963 = vpack.c.b16 %v815, %v811
        %v964 = vpack.c.b16 %v816, %v812
        %v965 = vpack.c.b16 %v817, %v813
        %v966 = vpack.c.b16 %v822, %v818
        %v967 = vpack.c.b16 %v823, %v819
        %v968 = vpack.c.b16 %v824, %v820
        %v969 = vpack.c.b16 %v825, %v821
        %v970 = vpack.c.b16 %v830, %v826
        %v971 = vpack.c.b16 %v831, %v827
        %v972 = vpack.c.b16 %v832, %v828
        %v973 = vpack.c.b16 %v833, %v829
        %v974 = vpack.c.b16 %v838, %v834
        %v975 = vpack.c.b16 %v839, %v835
        %v976 = vpack.c.b16 %v840, %v836
        %v977 = vpack.c.b16 %v841, %v837
        %v978 = vpack.c.b16 %v846, %v842
        %v979 = vpack.c.b16 %v847, %v843
        %v980 = vpack.c.b16 %v848, %v844
        %v981 = vpack.c.b16 %v849, %v845
        %v982 = vpack.c.b16 %v854, %v850
        %v983 = vpack.c.b16 %v855, %v851
        %v984 = vpack.c.b16 %v856, %v852
        %v985 = vpack.c.b16 %v857, %v853
        %1114 = vmatprep.subr.bf16.mxu0 %v887
        %1115 = vmatpush1.bf16.msra.mxu0 %v886
        %1116 = vmatprep.subr.bf16.mxu0 %v883
        %1117 = vmatpush1.bf16.msra.mxu0 %v882
        %1118 = vmatprep.subr.bf16.mxu0 %v879
        %1119 = vmatpush1.bf16.msra.mxu0 %v878
        %1120 = vmatprep.subr.bf16.mxu0 %v875
        %1121 = vmatpush1.bf16.msra.mxu0 %v874
        %1122 = vmatprep.subr.bf16.mxu0 %v871
        %1123 = vmatpush1.bf16.msra.mxu0 %v870
        %1124 = vmatprep.subr.bf16.mxu0 %v867
        %1125 = vmatpush1.bf16.msra.mxu0 %v866
        %1126 = vmatprep.subr.bf16.mxu0 %v863
        %1127 = vmatpush1.bf16.msra.mxu0 %v862
        %1128 = vmatprep.subr.bf16.mxu0 %v859
        %1129 = vmatpush1.bf16.msra.mxu0 %v858
        %1130 = vmatprep.subr.bf16.mxu0 %v919
        %1131 = vmatpush2.bf16.msra.mxu0 %v918
        %1132 = vmatprep.subr.bf16.mxu0 %v915
        %1133 = vmatpush2.bf16.msra.mxu0 %v914
        %1134 = vmatprep.subr.bf16.mxu0 %v911
        %1135 = vmatpush2.bf16.msra.mxu0 %v910
        %1136 = vmatprep.subr.bf16.mxu0 %v907
        %1137 = vmatpush2.bf16.msra.mxu0 %v906
        %1138 = vmatprep.subr.bf16.mxu0 %v903
        %1139 = vmatpush2.bf16.msra.mxu0 %v902
        %1140 = vmatprep.subr.bf16.mxu0 %v899
        %1141 = vmatpush2.bf16.msra.mxu0 %v898
        %1142 = vmatprep.subr.bf16.mxu0 %v895
        %1143 = vmatpush2.bf16.msra.mxu0 %v894
        %1144 = vmatprep.subr.bf16.mxu0 %v891
        %1145 = vmatpush2.bf16.msra.mxu0 %v890
        %1146 = vmatprep.mubr.bf16.mxu0 %v335
        %1147 = vmatmul.mubr.bf16.gmra.mxu0 %v334
        %v1148 = vpop.f32.mrf.mxu0
        %v1149 = vadd.f32 0.0, %v1148
        %v1150 = vpop.f32.mrf.mxu0
        %v1151 = vadd.f32 0.0, %v1150
        %v1152 = vpop.f32.mrf.mxu0
        %v1153 = vadd.f32 0.0, %v1152
        %v1154 = vpop.f32.mrf.mxu0
        %v1155 = vadd.f32 0.0, %v1154
        %1156 = vdwg.mxu0
        %1157 = vmatprep.subr.bf16.mxu0 %v951
        %1158 = vmatpush1.bf16.msra.mxu0 %v950
        %1159 = vmatprep.subr.bf16.mxu0 %v947
        %1160 = vmatpush1.bf16.msra.mxu0 %v946
        %1161 = vmatprep.subr.bf16.mxu0 %v943
        %1162 = vmatpush1.bf16.msra.mxu0 %v942
        %1163 = vmatprep.subr.bf16.mxu0 %v939
        %1164 = vmatpush1.bf16.msra.mxu0 %v938
        %1165 = vmatprep.subr.bf16.mxu0 %v935
        %1166 = vmatpush1.bf16.msra.mxu0 %v934
        %1167 = vmatprep.subr.bf16.mxu0 %v931
        %1168 = vmatpush1.bf16.msra.mxu0 %v930
        %1169 = vmatprep.subr.bf16.mxu0 %v927
        %1170 = vmatpush1.bf16.msra.mxu0 %v926
        %1171 = vmatprep.subr.bf16.mxu0 %v923
        %1172 = vmatpush1.bf16.msra.mxu0 %v922
        %1173 = vmatprep.subr.bf16.mxu0 %v983
        %1174 = vmatpush2.bf16.msra.mxu0 %v982
        %1175 = vmatprep.subr.bf16.mxu0 %v979
        %1176 = vmatpush2.bf16.msra.mxu0 %v978
        %1177 = vmatprep.subr.bf16.mxu0 %v975
        %1178 = vmatpush2.bf16.msra.mxu0 %v974
        %1179 = vmatprep.subr.bf16.mxu0 %v971
        %1180 = vmatpush2.bf16.msra.mxu0 %v970
        %1181 = vmatprep.subr.bf16.mxu0 %v967
        %1182 = vmatpush2.bf16.msra.mxu0 %v966
        %1183 = vmatprep.subr.bf16.mxu0 %v963
        %1184 = vmatpush2.bf16.msra.mxu0 %v962
        %1185 = vmatprep.subr.bf16.mxu0 %v959
        %1186 = vmatpush2.bf16.msra.mxu0 %v958
        %1187 = vmatprep.subr.bf16.mxu0 %v955
        %1188 = vmatpush2.bf16.msra.mxu0 %v954
        %1189 = vmatprep.mubr.bf16.mxu0 %v337
        %1190 = vmatmul.mubr.bf16.gmra.mxu0 %v336
        %v1191 = vpop.f32.mrf.mxu0
        %v1192 = vadd.f32 %v1149, %v1191
        %v1193 = vpop.f32.mrf.mxu0
        %v1194 = vadd.f32 %v1151, %v1193
        %v1195 = vpop.f32.mrf.mxu0
        %v1196 = vadd.f32 %v1153, %v1195
        %v1197 = vpop.f32.mrf.mxu0
        %v1198 = vadd.f32 %v1155, %v1197
        %1199 = vdwg.mxu0
        %1200 = vmatprep.subr.bf16.mxu0 %v889
        %1201 = vmatpush1.bf16.msra.mxu0 %v888
        %1202 = vmatprep.subr.bf16.mxu0 %v885
        %1203 = vmatpush1.bf16.msra.mxu0 %v884
        %1204 = vmatprep.subr.bf16.mxu0 %v881
        %1205 = vmatpush1.bf16.msra.mxu0 %v880
        %1206 = vmatprep.subr.bf16.mxu0 %v877
        %1207 = vmatpush1.bf16.msra.mxu0 %v876
        %1208 = vmatprep.subr.bf16.mxu0 %v873
        %1209 = vmatpush1.bf16.msra.mxu0 %v872
        %1210 = vmatprep.subr.bf16.mxu0 %v869
        %1211 = vmatpush1.bf16.msra.mxu0 %v868
        %1212 = vmatprep.subr.bf16.mxu0 %v865
        %1213 = vmatpush1.bf16.msra.mxu0 %v864
        %1214 = vmatprep.subr.bf16.mxu0 %v861
        %1215 = vmatpush1.bf16.msra.mxu0 %v860
        %1216 = vmatprep.subr.bf16.mxu0 %v921
        %1217 = vmatpush2.bf16.msra.mxu0 %v920
        %1218 = vmatprep.subr.bf16.mxu0 %v917
        %1219 = vmatpush2.bf16.msra.mxu0 %v916
        %1220 = vmatprep.subr.bf16.mxu0 %v913
        %1221 = vmatpush2.bf16.msra.mxu0 %v912
        %1222 = vmatprep.subr.bf16.mxu0 %v909
        %1223 = vmatpush2.bf16.msra.mxu0 %v908
        %1224 = vmatprep.subr.bf16.mxu0 %v905
        %1225 = vmatpush2.bf16.msra.mxu0 %v904
        %1226 = vmatprep.subr.bf16.mxu0 %v901
        %1227 = vmatpush2.bf16.msra.mxu0 %v900
        %1228 = vmatprep.subr.bf16.mxu0 %v897
        %1229 = vmatpush2.bf16.msra.mxu0 %v896
        %1230 = vmatprep.subr.bf16.mxu0 %v893
        %1231 = vmatpush2.bf16.msra.mxu0 %v892
        %1232 = vmatprep.mubr.bf16.mxu0 %v335
        %1233 = vmatmul.mubr.bf16.gmra.mxu0 %v334
        %v1234 = vpop.f32.mrf.mxu0
        %v1235 = vadd.f32 0.0, %v1234
        %v1236 = vpop.f32.mrf.mxu0
        %v1237 = vadd.f32 0.0, %v1236
        %v1238 = vpop.f32.mrf.mxu0
        %v1239 = vadd.f32 0.0, %v1238
        %v1240 = vpop.f32.mrf.mxu0
        %v1241 = vadd.f32 0.0, %v1240
        %1242 = vdwg.mxu0
        %1243 = vmatprep.subr.bf16.mxu0 %v953
        %1244 = vmatpush1.bf16.msra.mxu0 %v952
        %1245 = vmatprep.subr.bf16.mxu0 %v949
        %1246 = vmatpush1.bf16.msra.mxu0 %v948
        %1247 = vmatprep.subr.bf16.mxu0 %v945
        %1248 = vmatpush1.bf16.msra.mxu0 %v944
        %1249 = vmatprep.subr.bf16.mxu0 %v941
        %1250 = vmatpush1.bf16.msra.mxu0 %v940
        %1251 = vmatprep.subr.bf16.mxu0 %v937
        %1252 = vmatpush1.bf16.msra.mxu0 %v936
        %1253 = vmatprep.subr.bf16.mxu0 %v933
        %1254 = vmatpush1.bf16.msra.mxu0 %v932
        %1255 = vmatprep.subr.bf16.mxu0 %v929
        %1256 = vmatpush1.bf16.msra.mxu0 %v928
        %1257 = vmatprep.subr.bf16.mxu0 %v925
        %1258 = vmatpush1.bf16.msra.mxu0 %v924
        %1259 = vmatprep.subr.bf16.mxu0 %v985
        %1260 = vmatpush2.bf16.msra.mxu0 %v984
        %1261 = vmatprep.subr.bf16.mxu0 %v981
        %1262 = vmatpush2.bf16.msra.mxu0 %v980
        %1263 = vmatprep.subr.bf16.mxu0 %v977
        %1264 = vmatpush2.bf16.msra.mxu0 %v976
        %1265 = vmatprep.subr.bf16.mxu0 %v973
        %1266 = vmatpush2.bf16.msra.mxu0 %v972
        %1267 = vmatprep.subr.bf16.mxu0 %v969
        %1268 = vmatpush2.bf16.msra.mxu0 %v968
        %1269 = vmatprep.subr.bf16.mxu0 %v965
        %1270 = vmatpush2.bf16.msra.mxu0 %v964
        %1271 = vmatprep.subr.bf16.mxu0 %v961
        %1272 = vmatpush2.bf16.msra.mxu0 %v960
        %1273 = vmatprep.subr.bf16.mxu0 %v957
        %1274 = vmatpush2.bf16.msra.mxu0 %v956
        %1275 = vmatprep.mubr.bf16.mxu0 %v337
        %1276 = vmatmul.mubr.bf16.gmra.mxu0 %v336
        %v1277 = vpop.f32.mrf.mxu0
        %v1278 = vadd.f32 %v1235, %v1277
        %v1279 = vpop.f32.mrf.mxu0
        %v1280 = vadd.f32 %v1237, %v1279
        %v1281 = vpop.f32.mrf.mxu0
        %v1282 = vadd.f32 %v1239, %v1281
        %v1283 = vpop.f32.mrf.mxu0
        %v1284 = vadd.f32 %v1241, %v1283
        %1285 = vdwg.mxu0
        %v1286 = vadd.f32 %v338, %v1192
        %v1287 = vadd.f32 %v339, %v1194
        %v1288 = vadd.f32 %v340, %v1278
        %v1289 = vadd.f32 %v341, %v1280
        %v1290 = vadd.f32 %v342, %v1196
        %v1291 = vadd.f32 %v343, %v1198
        %v1292 = vadd.f32 %v344, %v1282
        %v1293 = vadd.f32 %v345, %v1284
        %1294 = vst [vmem:[#allocation3] sm:$0xff] %v1286
        %1295 = vst [vmem:[#allocation3 + $0x8] sm:$0xff] %v1287
        %1296 = vst [vmem:[#allocation3 + $0x10] sm:$0xff] %v1288
        %1297 = vst [vmem:[#allocation3 + $0x18] sm:$0xff] %v1289
        %1298 = vst [vmem:[#allocation3 + $0x20] sm:$0xff] %v1290
        %1299 = vst [vmem:[#allocation3 + $0x28] sm:$0xff] %v1291
        %1300 = vst [vmem:[#allocation3 + $0x30] sm:$0xff] %v1292
        %1301 = vst [vmem:[#allocation3 + $0x38] sm:$0xff] %v1293
        %s1302 = sld [smem:[#allocation10 + %s43]]
        %p1303 = scmp.eq.s32.totalorder %s1302, 1
        // Predicated region
        $region49: #{forward.1} parent=31 // pred_check
          %p1304 = pneg %p1303
        $region50: #{forward.1} parent=31 // pred_check_branch
          %1306 = sbr.rel (%p1304) target = $region52
        $region51: #{forward.1} parent=31 // pred_region
          %v1307 = vld [vmem:[#allocation3] sm:$0xff]
          %v1308 = vld [vmem:[#allocation3 + $0x8] sm:$0xff]
          %v1309 = vld [vmem:[#allocation3 + $0x10] sm:$0xff]
          %v1310 = vld [vmem:[#allocation3 + $0x18] sm:$0xff]
          %v1311 = vld [vmem:[#allocation3 + $0x20] sm:$0xff]
          %v1312 = vld [vmem:[#allocation3 + $0x28] sm:$0xff]
          %v1313 = vld [vmem:[#allocation3 + $0x30] sm:$0xff]
          %v1314 = vld [vmem:[#allocation3 + $0x38] sm:$0xff]
          %v1315 = vld [vmem:[%s214] sm:$0xf]
          %v1317 = vlaneseq
          %v1318 = vshrl.u32 %v1317, 7
          %v1319 = vsub.s32 0, %v1318
          %v1320 = vrot.slane %v1315, %v1319
          %v1321 = vlaneseq
          %v1322 = vshrl.u32 %v1321, 7
          %v1323 = vsub.s32 1, %v1322
          %v1324 = vrot.slane %v1315, %v1323
          %v1325 = vlaneseq
          %v1326 = vshrl.u32 %v1325, 7
          %v1327 = vsub.s32 2, %v1326
          %v1328 = vrot.slane %v1315, %v1327
          %v1329 = vlaneseq
          %v1330 = vshrl.u32 %v1329, 7
          %v1331 = vsub.s32 3, %v1330
          %v1332 = vrot.slane %v1315, %v1331
          %v1337 = vadd.f32 %v1307, %v1320
          %v1338 = vadd.f32 %v1308, %v1324
          %v1339 = vadd.f32 %v1309, %v1328
          %v1340 = vadd.f32 %v1310, %v1332
          %v1341 = vadd.f32 %v1311, %v1320
          %v1342 = vadd.f32 %v1312, %v1324
          %v1343 = vadd.f32 %v1313, %v1328
          %v1344 = vadd.f32 %v1314, %v1332
          %s1345 = sld [smem:[#allocation8 + %s43]]
          %s1346 = scvt.s32.f32 %s1345
          %s1347 = sld [smem:[#allocation7 + %s43]]
          %s1348 = smul.u32 %s1347, 8
          %s1349 = smul.addr %s1348, 8
          %s1350 = scalar_lea.vmem [#allocation2], %s1349
          %v1351 = vld [vmem:[%s1350] sm:$0xff]
          %v1352 = vld [vmem:[%s1350 + $0x8] sm:$0xff]
          %v1353 = vld [vmem:[%s1350 + $0x10] sm:$0xff]
          %v1354 = vld [vmem:[%s1350 + $0x18] sm:$0xff]
          %v1355 = vld [vmem:[%s1350 + $0x20] sm:$0xff]
          %v1356 = vld [vmem:[%s1350 + $0x28] sm:$0xff]
          %v1357 = vld [vmem:[%s1350 + $0x30] sm:$0xff]
          %v1358 = vld [vmem:[%s1350 + $0x38] sm:$0xff]
          %v1359 = vstv %s1346
          %v1360 = vmul.f32 %v1359, %v1351
          %v1361 = vmul.f32 %v1359, %v1352
          %v1362 = vmul.f32 %v1359, %v1353
          %v1363 = vmul.f32 %v1359, %v1354
          %v1364 = vmul.f32 %v1359, %v1355
          %v1365 = vmul.f32 %v1359, %v1356
          %v1366 = vmul.f32 %v1359, %v1357
          %v1367 = vmul.f32 %v1359, %v1358
          %v1368 = vadd.f32 %v1337, %v1360
          %v1369 = vadd.f32 %v1338, %v1361
          %v1370 = vadd.f32 %v1339, %v1362
          %v1371 = vadd.f32 %v1340, %v1363
          %v1372 = vadd.f32 %v1341, %v1364
          %v1373 = vadd.f32 %v1342, %v1365
          %v1374 = vadd.f32 %v1343, %v1366
          %v1375 = vadd.f32 %v1344, %v1367
          %s1376 = sld [smem:[#allocation9 + %s43]]
          %p1377 = scmp.eq.s32.totalorder %s1376, 1
          %v1378 = vmax.f32 %v1368, 0.0
          %v1379 = vmax.f32 %v1369, 0.0
          %v1380 = vmax.f32 %v1370, 0.0
          %v1381 = vmax.f32 %v1371, 0.0
          %v1382 = vmax.f32 %v1372, 0.0
          %v1383 = vmax.f32 %v1373, 0.0
          %v1384 = vmax.f32 %v1374, 0.0
          %v1385 = vmax.f32 %v1375, 0.0
          %s1386 = scalar_select %p1377, 1, 0
          %v1387 = vstv %s1386
          %vm1388 = vcmp.eq.s32.totalorder %v1387, 1
          %v1389 = vsel %vm1388, %v1378, %v1368
          %v1390 = vsel %vm1388, %v1379, %v1369
          %v1391 = vsel %vm1388, %v1380, %v1370
          %v1392 = vsel %vm1388, %v1381, %v1371
          %v1393 = vsel %vm1388, %v1382, %v1372
          %v1394 = vsel %vm1388, %v1383, %v1373
          %v1395 = vsel %vm1388, %v1384, %v1374
          %v1396 = vsel %vm1388, %v1385, %v1375
          %p1397 = scmp.lt.s32.totalorder %s309, 12
          // Predicated region
          $region53: #{forward.1} parent=51 // pred_check
            %p1398 = pneg %p1397
          $region54: #{forward.1} parent=51 // pred_check_branch
            %1400 = sbr.rel (%p1398) target = $region56
          $region55: #{forward.1} parent=51 // pred_region
            %s1401 = smul.u32 %s309, 8
            %s1402 = smul.addr %s1401, 8
            %s1403 = scalar_lea.vmem [#allocation2], %s1402
            %1404 = vst [vmem:[%s1403] sm:$0xff] %v1389
            %1405 = vst [vmem:[%s1403 + $0x8] sm:$0xff] %v1390
            %1406 = vst [vmem:[%s1403 + $0x10] sm:$0xff] %v1391
            %1407 = vst [vmem:[%s1403 + $0x18] sm:$0xff] %v1392
            %1408 = vst [vmem:[%s1403 + $0x20] sm:$0xff] %v1393
            %1409 = vst [vmem:[%s1403 + $0x28] sm:$0xff] %v1394
            %1410 = vst [vmem:[%s1403 + $0x30] sm:$0xff] %v1395
            %1411 = vst [vmem:[%s1403 + $0x38] sm:$0xff] %v1396
          $region56: #{forward.1} parent=51 // pred_fallthru
            _
          %p1412 = scmp.ge.s32.totalorder %s309, 12
          // Predicated region
          $region57: #{forward.1} parent=51 // pred_check
            %p1413 = pneg %p1412
          $region58: #{forward.1} parent=51 // pred_check_branch
            %1415 = sbr.rel (%p1413) target = $region60
          $region59: #{forward.1} parent=51 // pred_region
            %1416 = vst [vmem:[%s10] sm:$0xff] %v1389
            %1417 = vst [vmem:[%s10 + $0x8] sm:$0xff] %v1390
            %1418 = vst [vmem:[%s10 + $0x10] sm:$0xff] %v1391
            %1419 = vst [vmem:[%s10 + $0x18] sm:$0xff] %v1392
            %1420 = vst [vmem:[%s10 + $0x20] sm:$0xff] %v1393
            %1421 = vst [vmem:[%s10 + $0x28] sm:$0xff] %v1394
            %1422 = vst [vmem:[%s10 + $0x30] sm:$0xff] %v1395
            %1423 = vst [vmem:[%s10 + $0x38] sm:$0xff] %v1396
          $region60: #{forward.1} parent=51 // pred_fallthru
            _
        $region52: #{forward.1} parent=31 // pred_fallthru
          _
        %p1424 = scmp.eq.s32.totalorder %s43, 7
        // Predicated region
        $region61: #{forward.1} parent=31 // pred_check
          %p1425 = pneg %p1424
        $region62: #{forward.1} parent=31 // pred_check_branch
          %1427 = sbr.rel (%p1425) target = $region64
        $region63: #{forward.1} parent=31 // pred_region
          %s1428 = scalar_lea.vmem [#allocation2], 256
          %v1429 = vld [vmem:[%s1428] sm:$0xff]
          %v1430 = vld [vmem:[%s1428 + $0x20] sm:$0xff]
          %1433 = vrot.lane.b32.xlu0 %v1429, 64
          %v1434 = vpop.permute.xlu0 %1433
          %1435 = vrot.lane.b32.xlu0 %v1430, 64
          %v1436 = vpop.permute.xlu0 %1435
          %v1439 = vmax.f32 %v1429, %v1434
          %v1440 = vmax.f32 %v1430, %v1436
          %v1441 = vld [vmem:[%s1428 + $0x10] sm:$0xff]
          %v1442 = vld [vmem:[%s1428 + $0x30] sm:$0xff]
          %v1443 = vmax.f32 %v1439, %v1441
          %v1444 = vmax.f32 %v1440, %v1442
          %1447 = vrot.lane.b32.xlu0 %v1441, 64
          %v1448 = vpop.permute.xlu0 %1447
          %1449 = vrot.lane.b32.xlu0 %v1442, 64
          %v1450 = vpop.permute.xlu0 %1449
          %v1453 = vmax.f32 %v1443, %v1448
          %v1454 = vmax.f32 %v1444, %v1450
          %vm1455 = vcmask 523264
          %1456 = vst.msk [vmem:[#allocation2] sm:$0xff] %vm1455, %v1453
          %1457 = vst.msk [vmem:[#allocation2 + $0x20] sm:$0xff] %vm1455, %v1454
          %v1458 = vld [vmem:[%s1428] sm:$0xff]
          %v1459 = vld [vmem:[%s1428 + $0x20] sm:$0xff]
          %v1460 = vld [vmem:[%s1428 + $0x8] sm:$0xff]
          %v1461 = vld [vmem:[%s1428 + $0x28] sm:$0xff]
          %1464 = vrot.lane.b32.xlu0 %v1460, 64
          %v1465 = vpop.permute.xlu0 %1464
          %1466 = vrot.lane.b32.xlu0 %v1461, 64
          %v1467 = vpop.permute.xlu0 %1466
          %v1470 = vmax.f32 %v1458, %v1465
          %v1471 = vmax.f32 %v1459, %v1467
          %v1472 = vmax.f32 %v1470, %v1460
          %v1473 = vmax.f32 %v1471, %v1461
          %v1474 = vld [vmem:[%s1428 + $0x10] sm:$0xff]
          %v1475 = vld [vmem:[%s1428 + $0x30] sm:$0xff]
          %v1476 = vmax.f32 %v1472, %v1474
          %v1477 = vmax.f32 %v1473, %v1475
          %v1478 = vld [vmem:[%s1428 + $0x18] sm:$0xff]
          %v1479 = vld [vmem:[%s1428 + $0x38] sm:$0xff]
          %1482 = vrot.lane.b32.xlu0 %v1478, 64
          %v1483 = vpop.permute.xlu0 %1482
          %1484 = vrot.lane.b32.xlu0 %v1479, 64
          %v1485 = vpop.permute.xlu0 %1484
          %v1488 = vmax.f32 %v1476, %v1483
          %v1489 = vmax.f32 %v1477, %v1485
          %v1490 = vmax.f32 %v1488, %v1478
          %v1491 = vmax.f32 %v1489, %v1479
          %vm1492 = vcmask 1048064
          %1493 = vst.msk [vmem:[#allocation2] sm:$0xff] %vm1492, %v1490
          %1494 = vst.msk [vmem:[#allocation2 + $0x20] sm:$0xff] %vm1492, %v1491
          %v1495 = vld [vmem:[%s1428 + $0x10] sm:$0xff]
          %v1496 = vld [vmem:[%s1428 + $0x30] sm:$0xff]
          %1499 = vrot.lane.b32.xlu0 %v1495, 64
          %v1500 = vpop.permute.xlu0 %1499
          %1501 = vrot.lane.b32.xlu0 %v1496, 64
          %v1502 = vpop.permute.xlu0 %1501
          %v1505 = vmax.f32 %v1495, %v1500
          %v1506 = vmax.f32 %v1496, %v1502
          %s1507 = scalar_lea.vmem [#allocation2], 320
          %v1508 = vld [vmem:[%s1507] sm:$0xff]
          %v1509 = vld [vmem:[%s1507 + $0x20] sm:$0xff]
          %v1510 = vmax.f32 %v1505, %v1508
          %v1511 = vmax.f32 %v1506, %v1509
          %1514 = vrot.lane.b32.xlu0 %v1508, 64
          %v1515 = vpop.permute.xlu0 %1514
          %1516 = vrot.lane.b32.xlu0 %v1509, 64
          %v1517 = vpop.permute.xlu0 %1516
          %v1520 = vmax.f32 %v1510, %v1515
          %v1521 = vmax.f32 %v1511, %v1517
          %v1522 = vld [vmem:[%s1507 + $0x10] sm:$0xff]
          %v1523 = vld [vmem:[%s1507 + $0x30] sm:$0xff]
          %v1524 = vmax.f32 %v1520, %v1522
          %v1525 = vmax.f32 %v1521, %v1523
          %1528 = vrot.lane.b32.xlu0 %v1522, 64
          %v1529 = vpop.permute.xlu0 %1528
          %1530 = vrot.lane.b32.xlu0 %v1523, 64
          %v1531 = vpop.permute.xlu0 %1530
          %v1534 = vmax.f32 %v1524, %v1529
          %v1535 = vmax.f32 %v1525, %v1531
          %1536 = vst.msk [vmem:[#allocation2 + $0x8] sm:$0xff] %vm1455, %v1534
          %1537 = vst.msk [vmem:[#allocation2 + $0x28] sm:$0xff] %vm1455, %v1535
          %v1538 = vld [vmem:[%s1428 + $0x10] sm:$0xff]
          %v1539 = vld [vmem:[%s1428 + $0x30] sm:$0xff]
          %v1540 = vld [vmem:[%s1428 + $0x18] sm:$0xff]
          %v1541 = vld [vmem:[%s1428 + $0x38] sm:$0xff]
          %1544 = vrot.lane.b32.xlu0 %v1540, 64
          %v1545 = vpop.permute.xlu0 %1544
          %1546 = vrot.lane.b32.xlu0 %v1541, 64
          %v1547 = vpop.permute.xlu0 %1546
          %v1550 = vmax.f32 %v1538, %v1545
          %v1551 = vmax.f32 %v1539, %v1547
          %v1552 = vmax.f32 %v1550, %v1540
          %v1553 = vmax.f32 %v1551, %v1541
          %v1554 = vld [vmem:[%s1507] sm:$0xff]
          %v1555 = vld [vmem:[%s1507 + $0x20] sm:$0xff]
          %v1556 = vmax.f32 %v1552, %v1554
          %v1557 = vmax.f32 %v1553, %v1555
          %v1558 = vld [vmem:[%s1507 + $0x8] sm:$0xff]
          %v1559 = vld [vmem:[%s1507 + $0x28] sm:$0xff]
          %1562 = vrot.lane.b32.xlu0 %v1558, 64
          %v1563 = vpop.permute.xlu0 %1562
          %1564 = vrot.lane.b32.xlu0 %v1559, 64
          %v1565 = vpop.permute.xlu0 %1564
          %v1568 = vmax.f32 %v1556, %v1563
          %v1569 = vmax.f32 %v1557, %v1565
          %v1570 = vmax.f32 %v1568, %v1558
          %v1571 = vmax.f32 %v1569, %v1559
          %v1572 = vld [vmem:[%s1507 + $0x10] sm:$0xff]
          %v1573 = vld [vmem:[%s1507 + $0x30] sm:$0xff]
          %v1574 = vmax.f32 %v1570, %v1572
          %v1575 = vmax.f32 %v1571, %v1573
          %v1576 = vld [vmem:[%s1507 + $0x18] sm:$0xff]
          %v1577 = vld [vmem:[%s1507 + $0x38] sm:$0xff]
          %1580 = vrot.lane.b32.xlu0 %v1576, 64
          %v1581 = vpop.permute.xlu0 %1580
          %1582 = vrot.lane.b32.xlu0 %v1577, 64
          %v1583 = vpop.permute.xlu0 %1582
          %v1586 = vmax.f32 %v1574, %v1581
          %v1587 = vmax.f32 %v1575, %v1583
          %v1588 = vmax.f32 %v1586, %v1576
          %v1589 = vmax.f32 %v1587, %v1577
          %1590 = vst.msk [vmem:[#allocation2 + $0x8] sm:$0xff] %vm1492, %v1588
          %1591 = vst.msk [vmem:[#allocation2 + $0x28] sm:$0xff] %vm1492, %v1589
        $region64: #{forward.1} parent=31 // pred_fallthru
          _
        // Predicated region
        $region65: #{forward.1} parent=31 // pred_check
          %p1592 = pneg %p129
        $region66: #{forward.1} parent=31 // pred_check_branch
          %1594 = sbr.rel (%p1592) target = $region68
        $region67: #{forward.1} parent=31 // pred_region
          _
        $region68: #{forward.1} parent=31 // pred_fallthru
          _
        // Predicated region
        $region69: #{forward.1} parent=31 // pred_check
          %p1595 = pneg %p129
        $region70: #{forward.1} parent=31 // pred_check_branch
          %1597 = sbr.rel (%p1595) target = $region72
        $region71: #{forward.1} parent=31 // pred_region
          _
        $region72: #{forward.1} parent=31 // pred_fallthru
          _
      $region32: #{forward.1} parent=5 // pred_fallthru
        _
      %p1598 = scmp.le.s32.totalorder 2, %s38
      // Predicated region
      $region73: #{forward.1} parent=5 // pred_check
        %p1599 = pneg %p1598
      $region74: #{forward.1} parent=5 // pred_check_branch
        %1601 = sbr.rel (%p1599) target = $region76
      $region75: #{forward.1} parent=5 // pred_region
        %s1602 = ssub.s32 %s38, 2
      $region76: #{forward.1} parent=5 // pred_fallthru
        _
    $region6: #{forward.1} parent=1 // loop_footer
      %s42 = sadd.s32 1, %s38
    $region7: #{forward.1} parent=1 // loop_footer_branch
      %37 = sbr.rel target = $region3
    $region8: #{forward.1} parent=1 // loop_exit
      _
    %1603 = vsyncpa [#allocation13], 1
    %s1604 = scalar_lea.sflag [#allocation13], 1
    %1605 = vsyncpa %s1604, 1
    %1606 = vsyncpa [#allocation15], 1
    %s1607 = scalar_lea.sflag [#allocation15], 1
    %1608 = vsyncpa %s1607, 1

</llo_original>
